<compile_context>
chip_gen: v7x
topology: tpu7x:2x2x1
jax: 0.10.0
libtpu: 0.0.40
codegen_flags: <defaults>
</compile_context>

<pallas_src>
import math

import jax
import jax.numpy as jnp
import numpy as np
from jax.experimental import pallas as pl
from jax.experimental.pallas import tpu as pltpu


# ----------------------------- Pallas kernel ------------------------------- #

def make_fused_lstm_fc_kernel(num_layers, seq_len, batch_pad, hidden):
    """Kernel computing: stacked LSTM layers -> last timestep -> fc."""
    S, Bp, H = seq_len, batch_pad, hidden
    G = 4 * H  # gate width; one full 128-lane vreg when H == 32

    def kernel(*refs):
        # refs = (x2d, [wih_pad, whh_pad, b] * num_layers, wfc_pad, bfc, out)
        x_ref = refs[0]                                    # (S*Bp, Fp) time-major
        wfc_ref = refs[1 + 3 * num_layers]                 # (G, C) rows [H,2H) live
        bfc_ref = refs[2 + 3 * num_layers]                 # (1, C)
        out_ref = refs[3 + 3 * num_layers]                 # (Bp, C)

        # Static per-lane constants, hoisted out of all loops.
        # PyTorch gate order i, f, g, o -> the tanh gate g occupies block 2.
        lane = jax.lax.broadcasted_iota(jnp.int32, (Bp, G), 1)
        is_g = jnp.logical_and(lane >= 2 * H, lane < 3 * H)
        # sigmoid(z) = 0.5*(1 + tanh(z/2)) on i/f/o lanes; plain tanh on g lanes.
        pre_scale = jnp.where(is_g, 1.0, 0.5).astype(jnp.float32)
        post_off = jnp.where(is_g, 0.0, 0.5).astype(jnp.float32)

        x_cur = x_ref[...]                                 # (S*Bp, F_layer)
        h_full = None
        for l in range(num_layers):
            wih = refs[1 + 3 * l][...]                     # (F_layer, G)
            whh = refs[2 + 3 * l][...]                     # (G, G) rows [H,2H) live
            b = refs[3 + 3 * l][...]                       # (1, G)

            # Hoisted input projection for ALL timesteps: one batched matmul.
            gx = jnp.dot(x_cur, wih, preferred_element_type=jnp.float32) + b

            keep_seq = l < num_layers - 1
            h_full = jnp.zeros((Bp, G), jnp.float32)
            c_full = jnp.zeros((Bp, G), jnp.float32)
            h_list = []
            for t in range(S):                             # static, fully unrolled
                gates = gx[t * Bp:(t + 1) * Bp, :] + jnp.dot(
                    h_full, whh, preferred_element_type=jnp.float32)   # (Bp, G)
                # One EUP pass over the full-width vreg.
                y = jnp.tanh(gates * pre_scale)
                act = y * pre_scale + post_off             # [i | f | g | o]
                # Full-lane-width state update; live block is block 1 (lanes
                # [H, 2H)); other blocks hold bounded garbage that is killed by
                # the zero-padded weight rows in the matmuls below.
                r2 = pltpu.roll(act, 2 * H, 1)             # [g | o | i | f]
                prod = act * r2                            # [ig | fo | ig | fo]
                ig = pltpu.roll(prod, H, 1)                # block 1 -> i*g
                c_full = act * c_full + ig                 # block 1: f*c + i*g
                h_full = r2 * jnp.tanh(c_full)             # block 1: o*tanh(c)
                if keep_seq:
                    h_list.append(h_full)
            if keep_seq:
                # Carry the hidden sequence as SSA values (no VMEM scratch, no
                # masked partial stores); feeds the next layer's hoisted matmul.
                x_cur = jnp.concatenate(h_list, axis=0)    # (S*Bp, G)

        # Final linear on the last timestep's hidden state; single HBM write.
        out_ref[...] = (jnp.dot(h_full, wfc_ref[...],
                                preferred_element_type=jnp.float32)
                        + bfc_ref[...]).astype(out_ref.dtype)

    return kernel


# ------------------------------ Wrapper ------------------------------------ #

def lstm_forward(x, params):
    """x: (B, S, input_size) batch_first, like the PyTorch module.

    Returns (B, num_classes)."""
    B, S, F = x.shape
    num_layers = len(params["layers"])
    H = params["layers"][0]["whh_t"].shape[0]
    C = params["fc_w_t"].shape[1]
    G = 4 * H

    Bp = max(8, ((B + 7) // 8) * 8)          # pad batch to sublane tiles
    Fp = max(8, ((F + 7) // 8) * 8)          # pad layer-0 features (18 -> 24)

    # Time-major, batch/feature zero-padded, flattened so row t*Bp + b is
    # (timestep t, batch b).
    xt = jnp.transpose(x, (1, 0, 2)).astype(jnp.float32)            # (S, B, F)
    xt = jnp.pad(xt, ((0, 0), (0, Bp - B), (0, Fp - F)))
    x2d = xt.reshape(S * Bp, Fp)

    args = [x2d]
    for li, lp in enumerate(params["layers"]):
        f_in = lp["wih_t"].shape[0]
        if li == 0:
            wih_pad = jnp.zeros((Fp, G), jnp.float32).at[:f_in, :].set(lp["wih_t"])
        else:
            # Next-layer input is the full-width h (live block = lanes [H,2H)).
            wih_pad = jnp.zeros((G, G), jnp.float32).at[H:2 * H, :].set(lp["wih_t"])
        whh_pad = jnp.zeros((G, G), jnp.float32).at[H:2 * H, :].set(lp["whh_t"])
        args += [wih_pad, whh_pad, lp["b"]]
    wfc_pad = jnp.zeros((G, C), jnp.float32).at[H:2 * H, :].set(params["fc_w_t"])
    args += [wfc_pad, params["fc_b"]]

    kernel = make_fused_lstm_fc_kernel(num_layers, S, Bp, H)
    out = pl.pallas_call(
        kernel,
        out_shape=jax.ShapeDtypeStruct((Bp, C), jnp.float32),
    )(*args)
    return out[:B]


lstm_forward_jit = jax.jit(lstm_forward)


def init_params(key, input_size, hidden_size, num_layers, num_classes):
    """PyTorch-style uniform(-1/sqrt(H), 1/sqrt(H)) init, deterministic."""
    params = {"layers": []}
    k = 1.0 / math.sqrt(hidden_size)
    for layer in range(num_layers):
        in_f = input_size if layer == 0 else hidden_size
        key, k1, k2, k3, k4 = jax.random.split(key, 5)
        w_ih = jax.random.uniform(k1, (4 * hidden_size, in_f), jnp.float32, -k, k)
        w_hh = jax.random.uniform(k2, (4 * hidden_size, hidden_size), jnp.float32, -k, k)
        b_ih = jax.random.uniform(k3, (4 * hidden_size,), jnp.float32, -k, k)
        b_hh = jax.random.uniform(k4, (4 * hidden_size,), jnp.float32, -k, k)
        params["layers"].append({
            "wih_t": w_ih.T,                                   # (F, 4H)
            "whh_t": w_hh.T,                                   # (H, 4H)
            "b": (b_ih + b_hh).reshape(1, 4 * hidden_size),    # (1, 4H)
        })
    key, k5, k6 = jax.random.split(key, 3)
    kf = 1.0 / math.sqrt(hidden_size)
    w_fc = jax.random.uniform(k5, (num_classes, hidden_size), jnp.float32, -kf, kf)
    b_fc = jax.random.uniform(k6, (num_classes,), jnp.float32, -kf, kf)
    params["fc_w_t"] = w_fc.T                    # (H, C)
    params["fc_b"] = b_fc.reshape(1, num_classes)
    return params


# --------------------------- Pure-JAX reference ----------------------------- #

def lstm_forward_ref(x, params):
    h_seq = jnp.transpose(x, (1, 0, 2))
    for lp in params["layers"]:
        S, B, _ = h_seq.shape
        H = lp["whh_t"].shape[0]

        def step(carry, x_t, lp=lp, H=H):
            h, c = carry
            gates = x_t @ lp["wih_t"] + h @ lp["whh_t"] + lp["b"]
            i = jax.nn.sigmoid(gates[:, 0 * H:1 * H])
            f = jax.nn.sigmoid(gates[:, 1 * H:2 * H])
            g = jnp.tanh(gates[:, 2 * H:3 * H])
            o = jax.nn.sigmoid(gates[:, 3 * H:4 * H])
            c = f * c + i * g
            h = o * jnp.tanh(c)
            return (h, c), h

        init = (jnp.zeros((B, H), jnp.float32), jnp.zeros((B, H), jnp.float32))
        _, h_seq = jax.lax.scan(step, init, h_seq)
    return h_seq[-1] @ params["fc_w_t"] + params["fc_b"]


# ---------------------------------- Main ------------------------------------ #

if __name__ == "__main__":
    input_size = 18
    hidden_size = 32
    num_layers = 2
    num_classes = 5
    batch = 2
    seq_len = 8

    key = jax.random.PRNGKey(0)
    key, xk, pk = jax.random.split(key, 3)
    x = jax.random.normal(xk, (batch, seq_len, input_size), jnp.float32)
    params = init_params(pk, input_size, hidden_size, num_layers, num_classes)

    out = lstm_forward_jit(x, params)
    out = jax.block_until_ready(out)

    ref = jax.block_until_ready(lstm_forward_ref(x, params))
    np.testing.assert_allclose(np.asarray(out), np.asarray(ref), rtol=1e-4, atol=1e-4)

    assert out.shape == (batch, num_classes)
    print("KERNEL_OK")
</pallas_src>

<mosaic_0001>
module attributes {stable_mosaic.version = 11 : i64} {
  func.func @kernel(%arg0: memref<64x24xf32, #tpu.memory_space<vmem>>, %arg1: memref<24x128xf32, #tpu.memory_space<vmem>>, %arg2: memref<128x128xf32, #tpu.memory_space<vmem>>, %arg3: memref<1x128xf32, #tpu.memory_space<vmem>>, %arg4: memref<128x128xf32, #tpu.memory_space<vmem>>, %arg5: memref<128x128xf32, #tpu.memory_space<vmem>>, %arg6: memref<1x128xf32, #tpu.memory_space<vmem>>, %arg7: memref<128x5xf32, #tpu.memory_space<vmem>>, %arg8: memref<1x5xf32, #tpu.memory_space<vmem>>, %arg9: memref<8x5xf32, #tpu.memory_space<vmem>>) attributes {dimension_semantics = [], scalar_prefetch = 0 : i64, scratch_operands = 0 : i64, tpu.core_type = #tpu.core_type<tc>} {
    %0 = tpu.iota {dimensions = array<i32: 1>} : vector<8x128xi32>
    %c64_i32 = arith.constant 64 : i32
    %1 = vector.broadcast %c64_i32 : i32 to vector<8x128xi32>
    %2 = arith.cmpi sge, %0, %1 : vector<8x128xi32>
    %c96_i32 = arith.constant 96 : i32
    %3 = vector.broadcast %c96_i32 : i32 to vector<8x128xi32>
    %4 = arith.cmpi slt, %0, %3 : vector<8x128xi32>
    %5 = arith.andi %2, %4 : vector<8x128xi1>
    %cst = arith.constant 1.000000e+00 : f32
    %cst_0 = arith.constant 5.000000e-01 : f32
    %6 = vector.broadcast %cst : f32 to vector<8x128xf32>
    %7 = vector.broadcast %cst_0 : f32 to vector<8x128xf32>
    %8 = arith.select %5, %6, %7 : vector<8x128xi1>, vector<8x128xf32>
    %cst_1 = arith.constant 0.000000e+00 : f32
    %cst_2 = arith.constant 5.000000e-01 : f32
    %9 = vector.broadcast %cst_1 : f32 to vector<8x128xf32>
    %10 = vector.broadcast %cst_2 : f32 to vector<8x128xf32>
    %11 = arith.select %5, %9, %10 : vector<8x128xi1>, vector<8x128xf32>
    %c0 = arith.constant 0 : index
    %c0_3 = arith.constant 0 : index
    %12 = vector.load %arg0[%c0, %c0_3] : memref<64x24xf32, #tpu.memory_space<vmem>>, vector<64x24xf32>
    %c0_4 = arith.constant 0 : index
    %c0_5 = arith.constant 0 : index
    %13 = vector.load %arg1[%c0_4, %c0_5] : memref<24x128xf32, #tpu.memory_space<vmem>>, vector<24x128xf32>
    %c0_6 = arith.constant 0 : index
    %c0_7 = arith.constant 0 : index
    %14 = vector.load %arg2[%c0_6, %c0_7] : memref<128x128xf32, #tpu.memory_space<vmem>>, vector<128x128xf32>
    %c0_8 = arith.constant 0 : index
    %c0_9 = arith.constant 0 : index
    %15 = vector.load %arg3[%c0_8, %c0_9] : memref<1x128xf32, #tpu.memory_space<vmem>>, vector<1x128xf32>
    %cst_10 = arith.constant dense<0.000000e+00> : vector<64x128xf32>
    %16 = tpu.matmul %12, %13, %cst_10 {dimension_numbers = #tpu.dot_dimension_numbers<[1], [0], [0], [1], [0, 0, 1, 1], [], []>} : vector<64x24xf32>, vector<24x128xf32>, vector<64x128xf32> -> vector<64x128xf32>
    %17 = vector.broadcast %15 : vector<1x128xf32> to vector<64x128xf32>
    %18 = arith.addf %16, %17 : vector<64x128xf32>
    %cst_11 = arith.constant 0.000000e+00 : f32
    %19 = vector.broadcast %cst_11 : f32 to vector<8x128xf32>
    %cst_12 = arith.constant 0.000000e+00 : f32
    %20 = vector.broadcast %cst_12 : f32 to vector<8x128xf32>
    %21 = vector.extract_strided_slice %18 {offsets = [0, 0], sizes = [8, 128], strides = [1, 1]} : vector<64x128xf32> to vector<8x128xf32>
    %cst_13 = arith.constant dense<0.000000e+00> : vector<8x128xf32>
    %22 = tpu.matmul %19, %14, %cst_13 {dimension_numbers = #tpu.dot_dimension_numbers<[1], [0], [0], [1], [0, 0, 1, 1], [], []>} : vector<8x128xf32>, vector<128x128xf32>, vector<8x128xf32> -> vector<8x128xf32>
    %23 = arith.addf %21, %22 : vector<8x128xf32>
    %24 = arith.mulf %23, %8 : vector<8x128xf32>
    %25 = math.tanh %24 : vector<8x128xf32>
    %26 = arith.mulf %25, %8 : vector<8x128xf32>
    %27 = arith.addf %26, %11 : vector<8x128xf32>
    %c64_i32_14 = arith.constant 64 : i32
    %28 = tpu.dynamic_rotate %27 by %c64_i32_14 dim 1 : vector<8x128xf32>, i32 -> vector<8x128xf32>
    %29 = arith.mulf %27, %28 : vector<8x128xf32>
    %c32_i32 = arith.constant 32 : i32
    %30 = tpu.dynamic_rotate %29 by %c32_i32 dim 1 : vector<8x128xf32>, i32 -> vector<8x128xf32>
    %31 = arith.mulf %27, %20 : vector<8x128xf32>
    %32 = arith.addf %31, %30 : vector<8x128xf32>
    %33 = math.tanh %32 : vector<8x128xf32>
    %34 = arith.mulf %28, %33 : vector<8x128xf32>
    %35 = vector.extract_strided_slice %18 {offsets = [8, 0], sizes = [8, 128], strides = [1, 1]} : vector<64x128xf32> to vector<8x128xf32>
    %cst_15 = arith.constant dense<0.000000e+00> : vector<8x128xf32>
    %36 = tpu.matmul %34, %14, %cst_15 {dimension_numbers = #tpu.dot_dimension_numbers<[1], [0], [0], [1], [0, 0, 1, 1], [], []>} : vector<8x128xf32>, vector<128x128xf32>, vector<8x128xf32> -> vector<8x128xf32>
    %37 = arith.addf %35, %36 : vector<8x128xf32>
    %38 = arith.mulf %37, %8 : vector<8x128xf32>
    %39 = math.tanh %38 : vector<8x128xf32>
    %40 = arith.mulf %39, %8 : vector<8x128xf32>
    %41 = arith.addf %40, %11 : vector<8x128xf32>
    %c64_i32_16 = arith.constant 64 : i32
    %42 = tpu.dynamic_rotate %41 by %c64_i32_16 dim 1 : vector<8x128xf32>, i32 -> vector<8x128xf32>
    %43 = arith.mulf %41, %42 : vector<8x128xf32>
    %c32_i32_17 = arith.constant 32 : i32
    %44 = tpu.dynamic_rotate %43 by %c32_i32_17 dim 1 : vector<8x128xf32>, i32 -> vector<8x128xf32>
    %45 = arith.mulf %41, %32 : vector<8x128xf32>
    %46 = arith.addf %45, %44 : vector<8x128xf32>
    %47 = math.tanh %46 : vector<8x128xf32>
    %48 = arith.mulf %42, %47 : vector<8x128xf32>
    %49 = vector.extract_strided_slice %18 {offsets = [16, 0], sizes = [8, 128], strides = [1, 1]} : vector<64x128xf32> to vector<8x128xf32>
    %cst_18 = arith.constant dense<0.000000e+00> : vector<8x128xf32>
    %50 = tpu.matmul %48, %14, %cst_18 {dimension_numbers = #tpu.dot_dimension_numbers<[1], [0], [0], [1], [0, 0, 1, 1], [], []>} : vector<8x128xf32>, vector<128x128xf32>, vector<8x128xf32> -> vector<8x128xf32>
    %51 = arith.addf %49, %50 : vector<8x128xf32>
    %52 = arith.mulf %51, %8 : vector<8x128xf32>
    %53 = math.tanh %52 : vector<8x128xf32>
    %54 = arith.mulf %53, %8 : vector<8x128xf32>
    %55 = arith.addf %54, %11 : vector<8x128xf32>
    %c64_i32_19 = arith.constant 64 : i32
    %56 = tpu.dynamic_rotate %55 by %c64_i32_19 dim 1 : vector<8x128xf32>, i32 -> vector<8x128xf32>
    %57 = arith.mulf %55, %56 : vector<8x128xf32>
    %c32_i32_20 = arith.constant 32 : i32
    %58 = tpu.dynamic_rotate %57 by %c32_i32_20 dim 1 : vector<8x128xf32>, i32 -> vector<8x128xf32>
    %59 = arith.mulf %55, %46 : vector<8x128xf32>
    %60 = arith.addf %59, %58 : vector<8x128xf32>
    %61 = math.tanh %60 : vector<8x128xf32>
    %62 = arith.mulf %56, %61 : vector<8x128xf32>
    %63 = vector.extract_strided_slice %18 {offsets = [24, 0], sizes = [8, 128], strides = [1, 1]} : vector<64x128xf32> to vector<8x128xf32>
    %cst_21 = arith.constant dense<0.000000e+00> : vector<8x128xf32>
    %64 = tpu.matmul %62, %14, %cst_21 {dimension_numbers = #tpu.dot_dimension_numbers<[1], [0], [0], [1], [0, 0, 1, 1], [], []>} : vector<8x128xf32>, vector<128x128xf32>, vector<8x128xf32> -> vector<8x128xf32>
    %65 = arith.addf %63, %64 : vector<8x128xf32>
    %66 = arith.mulf %65, %8 : vector<8x128xf32>
    %67 = math.tanh %66 : vector<8x128xf32>
    %68 = arith.mulf %67, %8 : vector<8x128xf32>
    %69 = arith.addf %68, %11 : vector<8x128xf32>
    %c64_i32_22 = arith.constant 64 : i32
    %70 = tpu.dynamic_rotate %69 by %c64_i32_22 dim 1 : vector<8x128xf32>, i32 -> vector<8x128xf32>
    %71 = arith.mulf %69, %70 : vector<8x128xf32>
    %c32_i32_23 = arith.constant 32 : i32
    %72 = tpu.dynamic_rotate %71 by %c32_i32_23 dim 1 : vector<8x128xf32>, i32 -> vector<8x128xf32>
    %73 = arith.mulf %69, %60 : vector<8x128xf32>
    %74 = arith.addf %73, %72 : vector<8x128xf32>
    %75 = math.tanh %74 : vector<8x128xf32>
    %76 = arith.mulf %70, %75 : vector<8x128xf32>
    %77 = vector.extract_strided_slice %18 {offsets = [32, 0], sizes = [8, 128], strides = [1, 1]} : vector<64x128xf32> to vector<8x128xf32>
    %cst_24 = arith.constant dense<0.000000e+00> : vector<8x128xf32>
    %78 = tpu.matmul %76, %14, %cst_24 {dimension_numbers = #tpu.dot_dimension_numbers<[1], [0], [0], [1], [0, 0, 1, 1], [], []>} : vector<8x128xf32>, vector<128x128xf32>, vector<8x128xf32> -> vector<8x128xf32>
    %79 = arith.addf %77, %78 : vector<8x128xf32>
    %80 = arith.mulf %79, %8 : vector<8x128xf32>
    %81 = math.tanh %80 : vector<8x128xf32>
    %82 = arith.mulf %81, %8 : vector<8x128xf32>
    %83 = arith.addf %82, %11 : vector<8x128xf32>
    %c64_i32_25 = arith.constant 64 : i32
    %84 = tpu.dynamic_rotate %83 by %c64_i32_25 dim 1 : vector<8x128xf32>, i32 -> vector<8x128xf32>
    %85 = arith.mulf %83, %84 : vector<8x128xf32>
    %c32_i32_26 = arith.constant 32 : i32
    %86 = tpu.dynamic_rotate %85 by %c32_i32_26 dim 1 : vector<8x128xf32>, i32 -> vector<8x128xf32>
    %87 = arith.mulf %83, %74 : vector<8x128xf32>
    %88 = arith.addf %87, %86 : vector<8x128xf32>
    %89 = math.tanh %88 : vector<8x128xf32>
    %90 = arith.mulf %84, %89 : vector<8x128xf32>
    %91 = vector.extract_strided_slice %18 {offsets = [40, 0], sizes = [8, 128], strides = [1, 1]} : vector<64x128xf32> to vector<8x128xf32>
    %cst_27 = arith.constant dense<0.000000e+00> : vector<8x128xf32>
    %92 = tpu.matmul %90, %14, %cst_27 {dimension_numbers = #tpu.dot_dimension_numbers<[1], [0], [0], [1], [0, 0, 1, 1], [], []>} : vector<8x128xf32>, vector<128x128xf32>, vector<8x128xf32> -> vector<8x128xf32>
    %93 = arith.addf %91, %92 : vector<8x128xf32>
    %94 = arith.mulf %93, %8 : vector<8x128xf32>
    %95 = math.tanh %94 : vector<8x128xf32>
    %96 = arith.mulf %95, %8 : vector<8x128xf32>
    %97 = arith.addf %96, %11 : vector<8x128xf32>
    %c64_i32_28 = arith.constant 64 : i32
    %98 = tpu.dynamic_rotate %97 by %c64_i32_28 dim 1 : vector<8x128xf32>, i32 -> vector<8x128xf32>
    %99 = arith.mulf %97, %98 : vector<8x128xf32>
    %c32_i32_29 = arith.constant 32 : i32
    %100 = tpu.dynamic_rotate %99 by %c32_i32_29 dim 1 : vector<8x128xf32>, i32 -> vector<8x128xf32>
    %101 = arith.mulf %97, %88 : vector<8x128xf32>
    %102 = arith.addf %101, %100 : vector<8x128xf32>
    %103 = math.tanh %102 : vector<8x128xf32>
    %104 = arith.mulf %98, %103 : vector<8x128xf32>
    %105 = vector.extract_strided_slice %18 {offsets = [48, 0], sizes = [8, 128], strides = [1, 1]} : vector<64x128xf32> to vector<8x128xf32>
    %cst_30 = arith.constant dense<0.000000e+00> : vector<8x128xf32>
    %106 = tpu.matmul %104, %14, %cst_30 {dimension_numbers = #tpu.dot_dimension_numbers<[1], [0], [0], [1], [0, 0, 1, 1], [], []>} : vector<8x128xf32>, vector<128x128xf32>, vector<8x128xf32> -> vector<8x128xf32>
    %107 = arith.addf %105, %106 : vector<8x128xf32>
    %108 = arith.mulf %107, %8 : vector<8x128xf32>
    %109 = math.tanh %108 : vector<8x128xf32>
    %110 = arith.mulf %109, %8 : vector<8x128xf32>
    %111 = arith.addf %110, %11 : vector<8x128xf32>
    %c64_i32_31 = arith.constant 64 : i32
    %112 = tpu.dynamic_rotate %111 by %c64_i32_31 dim 1 : vector<8x128xf32>, i32 -> vector<8x128xf32>
    %113 = arith.mulf %111, %112 : vector<8x128xf32>
    %c32_i32_32 = arith.constant 32 : i32
    %114 = tpu.dynamic_rotate %113 by %c32_i32_32 dim 1 : vector<8x128xf32>, i32 -> vector<8x128xf32>
    %115 = arith.mulf %111, %102 : vector<8x128xf32>
    %116 = arith.addf %115, %114 : vector<8x128xf32>
    %117 = math.tanh %116 : vector<8x128xf32>
    %118 = arith.mulf %112, %117 : vector<8x128xf32>
    %119 = vector.extract_strided_slice %18 {offsets = [56, 0], sizes = [8, 128], strides = [1, 1]} : vector<64x128xf32> to vector<8x128xf32>
    %cst_33 = arith.constant dense<0.000000e+00> : vector<8x128xf32>
    %120 = tpu.matmul %118, %14, %cst_33 {dimension_numbers = #tpu.dot_dimension_numbers<[1], [0], [0], [1], [0, 0, 1, 1], [], []>} : vector<8x128xf32>, vector<128x128xf32>, vector<8x128xf32> -> vector<8x128xf32>
    %121 = arith.addf %119, %120 : vector<8x128xf32>
    %122 = arith.mulf %121, %8 : vector<8x128xf32>
    %123 = math.tanh %122 : vector<8x128xf32>
    %124 = arith.mulf %123, %8 : vector<8x128xf32>
    %125 = arith.addf %124, %11 : vector<8x128xf32>
    %c64_i32_34 = arith.constant 64 : i32
    %126 = tpu.dynamic_rotate %125 by %c64_i32_34 dim 1 : vector<8x128xf32>, i32 -> vector<8x128xf32>
    %127 = arith.mulf %125, %126 : vector<8x128xf32>
    %c32_i32_35 = arith.constant 32 : i32
    %128 = tpu.dynamic_rotate %127 by %c32_i32_35 dim 1 : vector<8x128xf32>, i32 -> vector<8x128xf32>
    %129 = arith.mulf %125, %116 : vector<8x128xf32>
    %130 = arith.addf %129, %128 : vector<8x128xf32>
    %131 = math.tanh %130 : vector<8x128xf32>
    %132 = arith.mulf %126, %131 : vector<8x128xf32>
    %133 = tpu.concatenate %34, %48, %62, %76, %90, %104, %118, %132 in 0 : vector<8x128xf32>, vector<8x128xf32>, vector<8x128xf32>, vector<8x128xf32>, vector<8x128xf32>, vector<8x128xf32>, vector<8x128xf32>, vector<8x128xf32> -> vector<64x128xf32>
    %c0_36 = arith.constant 0 : index
    %c0_37 = arith.constant 0 : index
    %134 = vector.load %arg4[%c0_36, %c0_37] : memref<128x128xf32, #tpu.memory_space<vmem>>, vector<128x128xf32>
    %c0_38 = arith.constant 0 : index
    %c0_39 = arith.constant 0 : index
    %135 = vector.load %arg5[%c0_38, %c0_39] : memref<128x128xf32, #tpu.memory_space<vmem>>, vector<128x128xf32>
    %c0_40 = arith.constant 0 : index
    %c0_41 = arith.constant 0 : index
    %136 = vector.load %arg6[%c0_40, %c0_41] : memref<1x128xf32, #tpu.memory_space<vmem>>, vector<1x128xf32>
    %cst_42 = arith.constant dense<0.000000e+00> : vector<64x128xf32>
    %137 = tpu.matmul %133, %134, %cst_42 {dimension_numbers = #tpu.dot_dimension_numbers<[1], [0], [0], [1], [0, 0, 1, 1], [], []>} : vector<64x128xf32>, vector<128x128xf32>, vector<64x128xf32> -> vector<64x128xf32>
    %138 = vector.broadcast %136 : vector<1x128xf32> to vector<64x128xf32>
    %139 = arith.addf %137, %138 : vector<64x128xf32>
    %cst_43 = arith.constant 0.000000e+00 : f32
    %140 = vector.broadcast %cst_43 : f32 to vector<8x128xf32>
    %cst_44 = arith.constant 0.000000e+00 : f32
    %141 = vector.broadcast %cst_44 : f32 to vector<8x128xf32>
    %142 = vector.extract_strided_slice %139 {offsets = [0, 0], sizes = [8, 128], strides = [1, 1]} : vector<64x128xf32> to vector<8x128xf32>
    %cst_45 = arith.constant dense<0.000000e+00> : vector<8x128xf32>
    %143 = tpu.matmul %140, %135, %cst_45 {dimension_numbers = #tpu.dot_dimension_numbers<[1], [0], [0], [1], [0, 0, 1, 1], [], []>} : vector<8x128xf32>, vector<128x128xf32>, vector<8x128xf32> -> vector<8x128xf32>
    %144 = arith.addf %142, %143 : vector<8x128xf32>
    %145 = arith.mulf %144, %8 : vector<8x128xf32>
    %146 = math.tanh %145 : vector<8x128xf32>
    %147 = arith.mulf %146, %8 : vector<8x128xf32>
    %148 = arith.addf %147, %11 : vector<8x128xf32>
    %c64_i32_46 = arith.constant 64 : i32
    %149 = tpu.dynamic_rotate %148 by %c64_i32_46 dim 1 : vector<8x128xf32>, i32 -> vector<8x128xf32>
    %150 = arith.mulf %148, %149 : vector<8x128xf32>
    %c32_i32_47 = arith.constant 32 : i32
    %151 = tpu.dynamic_rotate %150 by %c32_i32_47 dim 1 : vector<8x128xf32>, i32 -> vector<8x128xf32>
    %152 = arith.mulf %148, %141 : vector<8x128xf32>
    %153 = arith.addf %152, %151 : vector<8x128xf32>
    %154 = math.tanh %153 : vector<8x128xf32>
    %155 = arith.mulf %149, %154 : vector<8x128xf32>
    %156 = vector.extract_strided_slice %139 {offsets = [8, 0], sizes = [8, 128], strides = [1, 1]} : vector<64x128xf32> to vector<8x128xf32>
    %cst_48 = arith.constant dense<0.000000e+00> : vector<8x128xf32>
    %157 = tpu.matmul %155, %135, %cst_48 {dimension_numbers = #tpu.dot_dimension_numbers<[1], [0], [0], [1], [0, 0, 1, 1], [], []>} : vector<8x128xf32>, vector<128x128xf32>, vector<8x128xf32> -> vector<8x128xf32>
    %158 = arith.addf %156, %157 : vector<8x128xf32>
    %159 = arith.mulf %158, %8 : vector<8x128xf32>
    %160 = math.tanh %159 : vector<8x128xf32>
    %161 = arith.mulf %160, %8 : vector<8x128xf32>
    %162 = arith.addf %161, %11 : vector<8x128xf32>
    %c64_i32_49 = arith.constant 64 : i32
    %163 = tpu.dynamic_rotate %162 by %c64_i32_49 dim 1 : vector<8x128xf32>, i32 -> vector<8x128xf32>
    %164 = arith.mulf %162, %163 : vector<8x128xf32>
    %c32_i32_50 = arith.constant 32 : i32
    %165 = tpu.dynamic_rotate %164 by %c32_i32_50 dim 1 : vector<8x128xf32>, i32 -> vector<8x128xf32>
    %166 = arith.mulf %162, %153 : vector<8x128xf32>
    %167 = arith.addf %166, %165 : vector<8x128xf32>
    %168 = math.tanh %167 : vector<8x128xf32>
    %169 = arith.mulf %163, %168 : vector<8x128xf32>
    %170 = vector.extract_strided_slice %139 {offsets = [16, 0], sizes = [8, 128], strides = [1, 1]} : vector<64x128xf32> to vector<8x128xf32>
    %cst_51 = arith.constant dense<0.000000e+00> : vector<8x128xf32>
    %171 = tpu.matmul %169, %135, %cst_51 {dimension_numbers = #tpu.dot_dimension_numbers<[1], [0], [0], [1], [0, 0, 1, 1], [], []>} : vector<8x128xf32>, vector<128x128xf32>, vector<8x128xf32> -> vector<8x128xf32>
    %172 = arith.addf %170, %171 : vector<8x128xf32>
    %173 = arith.mulf %172, %8 : vector<8x128xf32>
    %174 = math.tanh %173 : vector<8x128xf32>
    %175 = arith.mulf %174, %8 : vector<8x128xf32>
    %176 = arith.addf %175, %11 : vector<8x128xf32>
    %c64_i32_52 = arith.constant 64 : i32
    %177 = tpu.dynamic_rotate %176 by %c64_i32_52 dim 1 : vector<8x128xf32>, i32 -> vector<8x128xf32>
    %178 = arith.mulf %176, %177 : vector<8x128xf32>
    %c32_i32_53 = arith.constant 32 : i32
    %179 = tpu.dynamic_rotate %178 by %c32_i32_53 dim 1 : vector<8x128xf32>, i32 -> vector<8x128xf32>
    %180 = arith.mulf %176, %167 : vector<8x128xf32>
    %181 = arith.addf %180, %179 : vector<8x128xf32>
    %182 = math.tanh %181 : vector<8x128xf32>
    %183 = arith.mulf %177, %182 : vector<8x128xf32>
    %184 = vector.extract_strided_slice %139 {offsets = [24, 0], sizes = [8, 128], strides = [1, 1]} : vector<64x128xf32> to vector<8x128xf32>
    %cst_54 = arith.constant dense<0.000000e+00> : vector<8x128xf32>
    %185 = tpu.matmul %183, %135, %cst_54 {dimension_numbers = #tpu.dot_dimension_numbers<[1], [0], [0], [1], [0, 0, 1, 1], [], []>} : vector<8x128xf32>, vector<128x128xf32>, vector<8x128xf32> -> vector<8x128xf32>
    %186 = arith.addf %184, %185 : vector<8x128xf32>
    %187 = arith.mulf %186, %8 : vector<8x128xf32>
    %188 = math.tanh %187 : vector<8x128xf32>
    %189 = arith.mulf %188, %8 : vector<8x128xf32>
    %190 = arith.addf %189, %11 : vector<8x128xf32>
    %c64_i32_55 = arith.constant 64 : i32
    %191 = tpu.dynamic_rotate %190 by %c64_i32_55 dim 1 : vector<8x128xf32>, i32 -> vector<8x128xf32>
    %192 = arith.mulf %190, %191 : vector<8x128xf32>
    %c32_i32_56 = arith.constant 32 : i32
    %193 = tpu.dynamic_rotate %192 by %c32_i32_56 dim 1 : vector<8x128xf32>, i32 -> vector<8x128xf32>
    %194 = arith.mulf %190, %181 : vector<8x128xf32>
    %195 = arith.addf %194, %193 : vector<8x128xf32>
    %196 = math.tanh %195 : vector<8x128xf32>
    %197 = arith.mulf %191, %196 : vector<8x128xf32>
    %198 = vector.extract_strided_slice %139 {offsets = [32, 0], sizes = [8, 128], strides = [1, 1]} : vector<64x128xf32> to vector<8x128xf32>
    %cst_57 = arith.constant dense<0.000000e+00> : vector<8x128xf32>
    %199 = tpu.matmul %197, %135, %cst_57 {dimension_numbers = #tpu.dot_dimension_numbers<[1], [0], [0], [1], [0, 0, 1, 1], [], []>} : vector<8x128xf32>, vector<128x128xf32>, vector<8x128xf32> -> vector<8x128xf32>
    %200 = arith.addf %198, %199 : vector<8x128xf32>
    %201 = arith.mulf %200, %8 : vector<8x128xf32>
    %202 = math.tanh %201 : vector<8x128xf32>
    %203 = arith.mulf %202, %8 : vector<8x128xf32>
    %204 = arith.addf %203, %11 : vector<8x128xf32>
    %c64_i32_58 = arith.constant 64 : i32
    %205 = tpu.dynamic_rotate %204 by %c64_i32_58 dim 1 : vector<8x128xf32>, i32 -> vector<8x128xf32>
    %206 = arith.mulf %204, %205 : vector<8x128xf32>
    %c32_i32_59 = arith.constant 32 : i32
    %207 = tpu.dynamic_rotate %206 by %c32_i32_59 dim 1 : vector<8x128xf32>, i32 -> vector<8x128xf32>
    %208 = arith.mulf %204, %195 : vector<8x128xf32>
    %209 = arith.addf %208, %207 : vector<8x128xf32>
    %210 = math.tanh %209 : vector<8x128xf32>
    %211 = arith.mulf %205, %210 : vector<8x128xf32>
    %212 = vector.extract_strided_slice %139 {offsets = [40, 0], sizes = [8, 128], strides = [1, 1]} : vector<64x128xf32> to vector<8x128xf32>
    %cst_60 = arith.constant dense<0.000000e+00> : vector<8x128xf32>
    %213 = tpu.matmul %211, %135, %cst_60 {dimension_numbers = #tpu.dot_dimension_numbers<[1], [0], [0], [1], [0, 0, 1, 1], [], []>} : vector<8x128xf32>, vector<128x128xf32>, vector<8x128xf32> -> vector<8x128xf32>
    %214 = arith.addf %212, %213 : vector<8x128xf32>
    %215 = arith.mulf %214, %8 : vector<8x128xf32>
    %216 = math.tanh %215 : vector<8x128xf32>
    %217 = arith.mulf %216, %8 : vector<8x128xf32>
    %218 = arith.addf %217, %11 : vector<8x128xf32>
    %c64_i32_61 = arith.constant 64 : i32
    %219 = tpu.dynamic_rotate %218 by %c64_i32_61 dim 1 : vector<8x128xf32>, i32 -> vector<8x128xf32>
    %220 = arith.mulf %218, %219 : vector<8x128xf32>
    %c32_i32_62 = arith.constant 32 : i32
    %221 = tpu.dynamic_rotate %220 by %c32_i32_62 dim 1 : vector<8x128xf32>, i32 -> vector<8x128xf32>
    %222 = arith.mulf %218, %209 : vector<8x128xf32>
    %223 = arith.addf %222, %221 : vector<8x128xf32>
    %224 = math.tanh %223 : vector<8x128xf32>
    %225 = arith.mulf %219, %224 : vector<8x128xf32>
    %226 = vector.extract_strided_slice %139 {offsets = [48, 0], sizes = [8, 128], strides = [1, 1]} : vector<64x128xf32> to vector<8x128xf32>
    %cst_63 = arith.constant dense<0.000000e+00> : vector<8x128xf32>
    %227 = tpu.matmul %225, %135, %cst_63 {dimension_numbers = #tpu.dot_dimension_numbers<[1], [0], [0], [1], [0, 0, 1, 1], [], []>} : vector<8x128xf32>, vector<128x128xf32>, vector<8x128xf32> -> vector<8x128xf32>
    %228 = arith.addf %226, %227 : vector<8x128xf32>
    %229 = arith.mulf %228, %8 : vector<8x128xf32>
    %230 = math.tanh %229 : vector<8x128xf32>
    %231 = arith.mulf %230, %8 : vector<8x128xf32>
    %232 = arith.addf %231, %11 : vector<8x128xf32>
    %c64_i32_64 = arith.constant 64 : i32
    %233 = tpu.dynamic_rotate %232 by %c64_i32_64 dim 1 : vector<8x128xf32>, i32 -> vector<8x128xf32>
    %234 = arith.mulf %232, %233 : vector<8x128xf32>
    %c32_i32_65 = arith.constant 32 : i32
    %235 = tpu.dynamic_rotate %234 by %c32_i32_65 dim 1 : vector<8x128xf32>, i32 -> vector<8x128xf32>
    %236 = arith.mulf %232, %223 : vector<8x128xf32>
    %237 = arith.addf %236, %235 : vector<8x128xf32>
    %238 = math.tanh %237 : vector<8x128xf32>
    %239 = arith.mulf %233, %238 : vector<8x128xf32>
    %240 = vector.extract_strided_slice %139 {offsets = [56, 0], sizes = [8, 128], strides = [1, 1]} : vector<64x128xf32> to vector<8x128xf32>
    %cst_66 = arith.constant dense<0.000000e+00> : vector<8x128xf32>
    %241 = tpu.matmul %239, %135, %cst_66 {dimension_numbers = #tpu.dot_dimension_numbers<[1], [0], [0], [1], [0, 0, 1, 1], [], []>} : vector<8x128xf32>, vector<128x128xf32>, vector<8x128xf32> -> vector<8x128xf32>
    %242 = arith.addf %240, %241 : vector<8x128xf32>
    %243 = arith.mulf %242, %8 : vector<8x128xf32>
    %244 = math.tanh %243 : vector<8x128xf32>
    %245 = arith.mulf %244, %8 : vector<8x128xf32>
    %246 = arith.addf %245, %11 : vector<8x128xf32>
    %c64_i32_67 = arith.constant 64 : i32
    %247 = tpu.dynamic_rotate %246 by %c64_i32_67 dim 1 : vector<8x128xf32>, i32 -> vector<8x128xf32>
    %248 = arith.mulf %246, %247 : vector<8x128xf32>
    %c32_i32_68 = arith.constant 32 : i32
    %249 = tpu.dynamic_rotate %248 by %c32_i32_68 dim 1 : vector<8x128xf32>, i32 -> vector<8x128xf32>
    %250 = arith.mulf %246, %237 : vector<8x128xf32>
    %251 = arith.addf %250, %249 : vector<8x128xf32>
    %252 = math.tanh %251 : vector<8x128xf32>
    %253 = arith.mulf %247, %252 : vector<8x128xf32>
    %c0_69 = arith.constant 0 : index
    %c0_70 = arith.constant 0 : index
    %254 = vector.load %arg7[%c0_69, %c0_70] : memref<128x5xf32, #tpu.memory_space<vmem>>, vector<128x5xf32>
    %cst_71 = arith.constant dense<0.000000e+00> : vector<8x5xf32>
    %255 = tpu.matmul %253, %254, %cst_71 {dimension_numbers = #tpu.dot_dimension_numbers<[1], [0], [0], [1], [0, 0, 1, 1], [], []>} : vector<8x128xf32>, vector<128x5xf32>, vector<8x5xf32> -> vector<8x5xf32>
    %c0_72 = arith.constant 0 : index
    %c0_73 = arith.constant 0 : index
    %256 = vector.load %arg8[%c0_72, %c0_73] : memref<1x5xf32, #tpu.memory_space<vmem>>, vector<1x5xf32>
    %257 = vector.broadcast %256 : vector<1x5xf32> to vector<8x5xf32>
    %258 = arith.addf %255, %257 : vector<8x5xf32>
    %c0_74 = arith.constant 0 : index
    %c0_75 = arith.constant 0 : index
    %259 = vector.load %arg9[%c0_74, %c0_75] : memref<8x5xf32, #tpu.memory_space<vmem>>, vector<8x5xf32>
    tpu.vector_store %arg9[%c0_74, %c0_75], %258 {strides = array<i32>} : memref<8x5xf32, #tpu.memory_space<vmem>>, vector<8x5xf32>,
    return
  }
}

</mosaic_0001>

<llo_original>
// kernel: lstm_forward.1
$region0: #{lstm_forward.1}
  #allocation0 [shape = 'u32[]', space=smem, size = 0x4, offset = 0x4, fixed_abs, tag = 'smem constant byte address 0x4 - core index']
  #allocation1 [shape = 'u32[144,128]{1,0:T(1,128)}', space=vmem, size = 0x12000, scoped, tag = 'internal scratch']
  %s0 = inlined_call_operand.vmem [shape: f32[64,24], index: 0, kind: input, shape index: {}]
  %s1 = inlined_call_operand.vmem [shape: f32[24,128], index: 1, kind: input, shape index: {}]
  %s2 = inlined_call_operand.vmem [shape: f32[128,128], index: 2, kind: input, shape index: {}]
  %s3 = inlined_call_operand.vmem [shape: f32[1,128], index: 3, kind: input, shape index: {}]
  %s4 = inlined_call_operand.vmem [shape: f32[128,128], index: 4, kind: input, shape index: {}]
  %s5 = inlined_call_operand.vmem [shape: f32[128,128], index: 5, kind: input, shape index: {}]
  %s6 = inlined_call_operand.vmem [shape: f32[1,128], index: 6, kind: input, shape index: {}]
  %s7 = inlined_call_operand.vmem [shape: f32[128,5], index: 7, kind: input, shape index: {}]
  %s8 = inlined_call_operand.vmem [shape: f32[1,5], index: 8, kind: input, shape index: {}]
  %s9 = inlined_call_operand.vmem [shape: f32[8,5], index: 9, kind: output, shape index: {}]
  %s10 = sld [smem:[#allocation0]]
  $region46: #{lstm_forward.1} parent=0
    _
  %s12 = ssub.s32 1, %s10
  %s13 = scalar_select 0, %s12, %s10
  // Predicated region
  $region2: #{lstm_forward.1} parent=0 // pred_check
    _
  $region3: #{lstm_forward.1} parent=0 // pred_check_branch
    %15 = sbr.rel (0) target = $region5
  $region4: #{lstm_forward.1} parent=0 // pred_region
    _
  $region5: #{lstm_forward.1} parent=0 // pred_fallthru
    _
  // Predicated region
  $region6: #{lstm_forward.1} parent=0 // pred_check
    _
  $region7: #{lstm_forward.1} parent=0 // pred_check_branch
    %17 = sbr.rel (0) target = $region9
  $region8: #{lstm_forward.1} parent=0 // pred_region
    _
  $region9: #{lstm_forward.1} parent=0 // pred_fallthru
    _
  // Predicated region
  $region10: #{lstm_forward.1} parent=0 // pred_check
    _
  $region11: #{lstm_forward.1} parent=0 // pred_check_branch
    %19 = sbr.rel (0) target = $region13
  $region12: #{lstm_forward.1} parent=0 // pred_region
    _
  $region13: #{lstm_forward.1} parent=0 // pred_fallthru
    _
  // Predicated region
  $region14: #{lstm_forward.1} parent=0 // pred_check
    _
  $region15: #{lstm_forward.1} parent=0 // pred_check_branch
    %21 = sbr.rel (0) target = $region17
  $region16: #{lstm_forward.1} parent=0 // pred_region
    _
  $region17: #{lstm_forward.1} parent=0 // pred_fallthru
    _
  // Predicated region
  $region18: #{lstm_forward.1} parent=0 // pred_check
    _
  $region19: #{lstm_forward.1} parent=0 // pred_check_branch
    %23 = sbr.rel (0) target = $region21
  $region20: #{lstm_forward.1} parent=0 // pred_region
    _
  $region21: #{lstm_forward.1} parent=0 // pred_fallthru
    _
  // Predicated region
  $region22: #{lstm_forward.1} parent=0 // pred_check
    _
  $region23: #{lstm_forward.1} parent=0 // pred_check_branch
    %25 = sbr.rel (0) target = $region25
  $region24: #{lstm_forward.1} parent=0 // pred_region
    _
  $region25: #{lstm_forward.1} parent=0 // pred_fallthru
    _
  // Predicated region
  $region26: #{lstm_forward.1} parent=0 // pred_check
    _
  $region27: #{lstm_forward.1} parent=0 // pred_check_branch
    %27 = sbr.rel (0) target = $region29
  $region28: #{lstm_forward.1} parent=0 // pred_region
    _
  $region29: #{lstm_forward.1} parent=0 // pred_fallthru
    _
  // Predicated region
  $region30: #{lstm_forward.1} parent=0 // pred_check
    _
  $region31: #{lstm_forward.1} parent=0 // pred_check_branch
    %29 = sbr.rel (0) target = $region33
  $region32: #{lstm_forward.1} parent=0 // pred_region
    _
  $region33: #{lstm_forward.1} parent=0 // pred_fallthru
    _
  // Predicated region
  $region34: #{lstm_forward.1} parent=0 // pred_check
    _
  $region35: #{lstm_forward.1} parent=0 // pred_check_branch
    %31 = sbr.rel (0) target = $region37
  $region36: #{lstm_forward.1} parent=0 // pred_region
    _
  $region37: #{lstm_forward.1} parent=0 // pred_fallthru
    _
  %v32 = vlaneseq
  %v33 = vand.u32 %v32, 127
  %vm34 = vcmp.ge.s32.totalorder %v33, 64
  %vm35 = vcmp.lt.s32.totalorder %v33, 96
  %vm36 = vmand %vm34, %vm35
  %v37 = vsel %vm36, 1.0, 0.5
  %v38 = vsel %vm36, 0.0, 0.5
  %v39 = vld [vmem:[%s0] sm:$0xff]
  %v40 = vld [vmem:[%s0 + $0x8] sm:$0xff]
  %v41 = vld [vmem:[%s0 + $0x10] sm:$0xff]
  %v42 = vld [vmem:[%s0 + $0x18] sm:$0xff]
  %v43 = vld [vmem:[%s0 + $0x20] sm:$0xff]
  %v44 = vld [vmem:[%s0 + $0x28] sm:$0xff]
  %v45 = vld [vmem:[%s0 + $0x30] sm:$0xff]
  %v46 = vld [vmem:[%s0 + $0x38] sm:$0xff]
  %v47 = vld [vmem:[%s1] sm:$0xff]
  %v48 = vld [vmem:[%s1 + $0x8] sm:$0xff]
  %v49 = vld [vmem:[%s1 + $0x10] sm:$0xff]
  %v50 = vld [vmem:[%s2] sm:$0xff]
  %v51 = vld [vmem:[%s2 + $0x8] sm:$0xff]
  %v52 = vld [vmem:[%s2 + $0x10] sm:$0xff]
  %v53 = vld [vmem:[%s2 + $0x18] sm:$0xff]
  %v54 = vld [vmem:[%s2 + $0x20] sm:$0xff]
  %v55 = vld [vmem:[%s2 + $0x28] sm:$0xff]
  %v56 = vld [vmem:[%s2 + $0x30] sm:$0xff]
  %v57 = vld [vmem:[%s2 + $0x38] sm:$0xff]
  %v58 = vld [vmem:[%s2 + $0x40] sm:$0xff]
  %v59 = vld [vmem:[%s2 + $0x48] sm:$0xff]
  %v60 = vld [vmem:[%s2 + $0x50] sm:$0xff]
  %v61 = vld [vmem:[%s2 + $0x58] sm:$0xff]
  %v62 = vld [vmem:[%s2 + $0x60] sm:$0xff]
  %v63 = vld [vmem:[%s2 + $0x68] sm:$0xff]
  %v64 = vld [vmem:[%s2 + $0x70] sm:$0xff]
  %v65 = vld [vmem:[%s2 + $0x78] sm:$0xff]
  %v66 = vld [vmem:[%s3] sm:$0x1]
  %v68 = vlaneseq
  %v69 = vshrl.u32 %v68, 7
  %v70 = vsub.s32 0, %v69
  %v71 = vrot.slane %v66, %v70
  %vm73 = vcmask 195584
  %v75 = vsel %vm73, %v39, 0
  %v78 = vsel %vm73, %v40, 0
  %v81 = vsel %vm73, %v41, 0
  %v84 = vsel %vm73, %v42, 0
  %v87 = vsel %vm73, %v43, 0
  %v90 = vsel %vm73, %v44, 0
  %v93 = vsel %vm73, %v45, 0
  %v96 = vsel %vm73, %v46, 0
  %98 = vmatprep.subr.mxu0 0.0
  %99 = vmatpush1.msra.mxu0 %v47
  %100 = vmatprep.subr.mxu0 0.0
  %101 = vmatpush1.msra.mxu0 %v48
  %102 = vmatprep.subr.mxu0 0.0
  %103 = vmatpush1.msra.mxu0 %v49
  %104 = vmatprep.subr.mxu0 0.0
  %105 = vmatpush1.msra.mxu0 0.0
  %106 = vmatprep.subr.mxu0 0.0
  %107 = vmatpush1.msra.mxu0 0.0
  %108 = vmatprep.subr.mxu0 0.0
  %109 = vmatpush1.msra.mxu0 0.0
  %110 = vmatprep.subr.mxu0 0.0
  %111 = vmatpush1.msra.mxu0 0.0
  %112 = vmatprep.subr.mxu0 0.0
  %113 = vmatpush1.msra.mxu0 0.0
  %114 = vmatprep.subr.mxu0 0.0
  %115 = vmatpush1.msra.mxu0 0.0
  %116 = vmatprep.subr.mxu0 0.0
  %117 = vmatpush1.msra.mxu0 0.0
  %118 = vmatprep.subr.mxu0 0.0
  %119 = vmatpush1.msra.mxu0 0.0
  %120 = vmatprep.subr.mxu0 0.0
  %121 = vmatpush1.msra.mxu0 0.0
  %122 = vmatprep.subr.mxu0 0.0
  %123 = vmatpush1.msra.mxu0 0.0
  %124 = vmatprep.subr.mxu0 0.0
  %125 = vmatpush1.msra.mxu0 0.0
  %126 = vmatprep.subr.mxu0 0.0
  %127 = vmatpush1.msra.mxu0 0.0
  %128 = vmatprep.subr.mxu0 0.0
  %129 = vmatpush1.msra.mxu0 0.0
  %130 = vmatprep.subr.mxu0 0.0
  %131 = vmatpush1.msra.mxu0 0.0
  %132 = vmatprep.subr.mxu0 0.0
  %133 = vmatpush1.msra.mxu0 0.0
  %134 = vmatprep.subr.mxu0 0.0
  %135 = vmatpush1.msra.mxu0 0.0
  %136 = vmatprep.subr.mxu0 0.0
  %137 = vmatpush1.msra.mxu0 0.0
  %138 = vmatprep.subr.mxu0 0.0
  %139 = vmatpush1.msra.mxu0 0.0
  %140 = vmatprep.subr.mxu0 0.0
  %141 = vmatpush1.msra.mxu0 0.0
  %142 = vmatprep.subr.mxu0 0.0
  %143 = vmatpush1.msra.mxu0 0.0
  %144 = vmatprep.subr.mxu0 0.0
  %145 = vmatpush1.msra.mxu0 0.0
  %146 = vmatprep.subr.mxu0 0.0
  %147 = vmatpush1.msra.mxu0 0.0
  %148 = vmatprep.subr.mxu0 0.0
  %149 = vmatpush1.msra.mxu0 0.0
  %150 = vmatprep.subr.mxu0 0.0
  %151 = vmatpush1.msra.mxu0 0.0
  %152 = vmatprep.subr.mxu0 0.0
  %153 = vmatpush1.msra.mxu0 0.0
  %154 = vmatprep.subr.mxu0 0.0
  %155 = vmatpush1.msra.mxu0 0.0
  %156 = vmatprep.subr.mxu0 0.0
  %157 = vmatpush1.msra.mxu0 0.0
  %158 = vmatprep.subr.mxu0 0.0
  %159 = vmatpush1.msra.mxu0 0.0
  %160 = vmatprep.subr.mxu0 0.0
  %161 = vmatpush1.msra.mxu0 0.0
  %162 = vmatprep.mubr.f32.mxu0 0.0
  %163 = vmatmul.mubr.f32.gmra.mrb[0].mxu0 %v75
  %v164 = vpop.f32.mrb[0].mxu0
  %v165 = vadd.f32 %v71, %v164
  %v166 = vpop.f32.mrb[0].mxu0
  %167 = vmatprep.mubr.f32.mxu0 0.0
  %168 = vmatmul.mubr.f32.gmra.mrb[0].mxu0 %v78
  %v169 = vpop.f32.mrb[0].mxu0
  %v170 = vadd.f32 %v71, %v169
  %v171 = vpop.f32.mrb[0].mxu0
  %172 = vmatprep.mubr.f32.mxu0 0.0
  %173 = vmatmul.mubr.f32.gmra.mrb[0].mxu0 %v81
  %v174 = vpop.f32.mrb[0].mxu0
  %v175 = vadd.f32 %v71, %v174
  %v176 = vpop.f32.mrb[0].mxu0
  %177 = vmatprep.mubr.f32.mxu0 0.0
  %178 = vmatmul.mubr.f32.gmra.mrb[0].mxu0 %v84
  %v179 = vpop.f32.mrb[0].mxu0
  %v180 = vadd.f32 %v71, %v179
  %v181 = vpop.f32.mrb[0].mxu0
  %182 = vmatprep.mubr.f32.mxu0 0.0
  %183 = vmatmul.mubr.f32.gmra.mrb[0].mxu0 %v87
  %v184 = vpop.f32.mrb[0].mxu0
  %v185 = vadd.f32 %v71, %v184
  %v186 = vpop.f32.mrb[0].mxu0
  %187 = vmatprep.mubr.f32.mxu0 0.0
  %188 = vmatmul.mubr.f32.gmra.mrb[0].mxu0 %v90
  %v189 = vpop.f32.mrb[0].mxu0
  %v190 = vadd.f32 %v71, %v189
  %v191 = vpop.f32.mrb[0].mxu0
  %192 = vmatprep.mubr.f32.mxu0 0.0
  %193 = vmatmul.mubr.f32.gmra.mrb[0].mxu0 %v93
  %v194 = vpop.f32.mrb[0].mxu0
  %v195 = vadd.f32 %v71, %v194
  %v196 = vpop.f32.mrb[0].mxu0
  %197 = vmatprep.mubr.f32.mxu0 0.0
  %198 = vmatmul.mubr.f32.gmra.mrb[0].mxu0 %v96
  %v199 = vpop.f32.mrb[0].mxu0
  %v200 = vadd.f32 %v71, %v199
  %v201 = vpop.f32.mrb[0].mxu0
  %202 = vdwg.mxu0
  %203 = vmatprep.subr.mxu0 0.0
  %204 = vmatpush1.msra.mxu0 %v50
  %205 = vmatprep.subr.mxu0 0.0
  %206 = vmatpush1.msra.mxu0 %v51
  %207 = vmatprep.subr.mxu0 0.0
  %208 = vmatpush1.msra.mxu0 %v52
  %209 = vmatprep.subr.mxu0 0.0
  %210 = vmatpush1.msra.mxu0 %v53
  %211 = vmatprep.subr.mxu0 0.0
  %212 = vmatpush1.msra.mxu0 %v54
  %213 = vmatprep.subr.mxu0 0.0
  %214 = vmatpush1.msra.mxu0 %v55
  %215 = vmatprep.subr.mxu0 0.0
  %216 = vmatpush1.msra.mxu0 %v56
  %217 = vmatprep.subr.mxu0 0.0
  %218 = vmatpush1.msra.mxu0 %v57
  %219 = vmatprep.subr.mxu0 0.0
  %220 = vmatpush1.msra.mxu0 %v58
  %221 = vmatprep.subr.mxu0 0.0
  %222 = vmatpush1.msra.mxu0 %v59
  %223 = vmatprep.subr.mxu0 0.0
  %224 = vmatpush1.msra.mxu0 %v60
  %225 = vmatprep.subr.mxu0 0.0
  %226 = vmatpush1.msra.mxu0 %v61
  %227 = vmatprep.subr.mxu0 0.0
  %228 = vmatpush1.msra.mxu0 %v62
  %229 = vmatprep.subr.mxu0 0.0
  %230 = vmatpush1.msra.mxu0 %v63
  %231 = vmatprep.subr.mxu0 0.0
  %232 = vmatpush1.msra.mxu0 %v64
  %233 = vmatprep.subr.mxu0 0.0
  %234 = vmatpush1.msra.mxu0 %v65
  %235 = vmatprep.subr.mxu0 0.0
  %236 = vmatpush1.msra.mxu0 0.0
  %237 = vmatprep.subr.mxu0 0.0
  %238 = vmatpush1.msra.mxu0 0.0
  %239 = vmatprep.subr.mxu0 0.0
  %240 = vmatpush1.msra.mxu0 0.0
  %241 = vmatprep.subr.mxu0 0.0
  %242 = vmatpush1.msra.mxu0 0.0
  %243 = vmatprep.subr.mxu0 0.0
  %244 = vmatpush1.msra.mxu0 0.0
  %245 = vmatprep.subr.mxu0 0.0
  %246 = vmatpush1.msra.mxu0 0.0
  %247 = vmatprep.subr.mxu0 0.0
  %248 = vmatpush1.msra.mxu0 0.0
  %249 = vmatprep.subr.mxu0 0.0
  %250 = vmatpush1.msra.mxu0 0.0
  %251 = vmatprep.subr.mxu0 0.0
  %252 = vmatpush1.msra.mxu0 0.0
  %253 = vmatprep.subr.mxu0 0.0
  %254 = vmatpush1.msra.mxu0 0.0
  %255 = vmatprep.subr.mxu0 0.0
  %256 = vmatpush1.msra.mxu0 0.0
  %257 = vmatprep.subr.mxu0 0.0
  %258 = vmatpush1.msra.mxu0 0.0
  %259 = vmatprep.subr.mxu0 0.0
  %260 = vmatpush1.msra.mxu0 0.0
  %261 = vmatprep.subr.mxu0 0.0
  %262 = vmatpush1.msra.mxu0 0.0
  %263 = vmatprep.subr.mxu0 0.0
  %264 = vmatpush1.msra.mxu0 0.0
  %265 = vmatprep.subr.mxu0 0.0
  %266 = vmatpush1.msra.mxu0 0.0
  %267 = vmatprep.mubr.f32.mxu0 0.0
  %268 = vmatmul.mubr.f32.gmra.mrb[0].mxu0 0.0
  %v269 = vpop.f32.mrb[0].mxu0
  %v270 = vadd.f32 0.0, %v269
  %v271 = vpop.f32.mrb[0].mxu0
  %272 = vdwg.mxu0
  %v273 = vadd.f32 %v165, %v270
  %v274 = vmul.f32 %v273, %v37
  %v275 = vtanh.pop %v274
  %v276 = vmul.f32 %v275, %v37
  %v277 = vadd.f32 %v276, %v38
  %278 = vrot.lane.b32.xlu0 %v277, 64
  %v279 = vpop.permute.xlu0 %278
  %v280 = vmul.f32 %v277, %v279
  %281 = vrot.lane.b32.xlu0 %v280, 32
  %v282 = vpop.permute.xlu0 %281
  %v283 = vmul.f32 %v277, 0.0
  %v284 = vadd.f32 %v283, %v282
  %v285 = vtanh.pop %v284
  %v286 = vmul.f32 %v279, %v285
  %287 = vmatprep.subr.mxu0 0.0
  %288 = vmatpush1.msra.mxu0 %v50
  %289 = vmatprep.subr.mxu0 0.0
  %290 = vmatpush1.msra.mxu0 %v51
  %291 = vmatprep.subr.mxu0 0.0
  %292 = vmatpush1.msra.mxu0 %v52
  %293 = vmatprep.subr.mxu0 0.0
  %294 = vmatpush1.msra.mxu0 %v53
  %295 = vmatprep.subr.mxu0 0.0
  %296 = vmatpush1.msra.mxu0 %v54
  %297 = vmatprep.subr.mxu0 0.0
  %298 = vmatpush1.msra.mxu0 %v55
  %299 = vmatprep.subr.mxu0 0.0
  %300 = vmatpush1.msra.mxu0 %v56
  %301 = vmatprep.subr.mxu0 0.0
  %302 = vmatpush1.msra.mxu0 %v57
  %303 = vmatprep.subr.mxu0 0.0
  %304 = vmatpush1.msra.mxu0 %v58
  %305 = vmatprep.subr.mxu0 0.0
  %306 = vmatpush1.msra.mxu0 %v59
  %307 = vmatprep.subr.mxu0 0.0
  %308 = vmatpush1.msra.mxu0 %v60
  %309 = vmatprep.subr.mxu0 0.0
  %310 = vmatpush1.msra.mxu0 %v61
  %311 = vmatprep.subr.mxu0 0.0
  %312 = vmatpush1.msra.mxu0 %v62
  %313 = vmatprep.subr.mxu0 0.0
  %314 = vmatpush1.msra.mxu0 %v63
  %315 = vmatprep.subr.mxu0 0.0
  %316 = vmatpush1.msra.mxu0 %v64
  %317 = vmatprep.subr.mxu0 0.0
  %318 = vmatpush1.msra.mxu0 %v65
  %319 = vmatprep.subr.mxu0 0.0
  %320 = vmatpush1.msra.mxu0 0.0
  %321 = vmatprep.subr.mxu0 0.0
  %322 = vmatpush1.msra.mxu0 0.0
  %323 = vmatprep.subr.mxu0 0.0
  %324 = vmatpush1.msra.mxu0 0.0
  %325 = vmatprep.subr.mxu0 0.0
  %326 = vmatpush1.msra.mxu0 0.0
  %327 = vmatprep.subr.mxu0 0.0
  %328 = vmatpush1.msra.mxu0 0.0
  %329 = vmatprep.subr.mxu0 0.0
  %330 = vmatpush1.msra.mxu0 0.0
  %331 = vmatprep.subr.mxu0 0.0
  %332 = vmatpush1.msra.mxu0 0.0
  %333 = vmatprep.subr.mxu0 0.0
  %334 = vmatpush1.msra.mxu0 0.0
  %335 = vmatprep.subr.mxu0 0.0
  %336 = vmatpush1.msra.mxu0 0.0
  %337 = vmatprep.subr.mxu0 0.0
  %338 = vmatpush1.msra.mxu0 0.0
  %339 = vmatprep.subr.mxu0 0.0
  %340 = vmatpush1.msra.mxu0 0.0
  %341 = vmatprep.subr.mxu0 0.0
  %342 = vmatpush1.msra.mxu0 0.0
  %343 = vmatprep.subr.mxu0 0.0
  %344 = vmatpush1.msra.mxu0 0.0
  %345 = vmatprep.subr.mxu0 0.0
  %346 = vmatpush1.msra.mxu0 0.0
  %347 = vmatprep.subr.mxu0 0.0
  %348 = vmatpush1.msra.mxu0 0.0
  %349 = vmatprep.subr.mxu0 0.0
  %350 = vmatpush1.msra.mxu0 0.0
  %351 = vmatprep.mubr.f32.mxu0 0.0
  %352 = vmatmul.mubr.f32.gmra.mrb[0].mxu0 %v286
  %v353 = vpop.f32.mrb[0].mxu0
  %v354 = vadd.f32 0.0, %v353
  %v355 = vpop.f32.mrb[0].mxu0
  %356 = vdwg.mxu0
  %v357 = vadd.f32 %v170, %v354
  %v358 = vmul.f32 %v357, %v37
  %v359 = vtanh.pop %v358
  %v360 = vmul.f32 %v359, %v37
  %v361 = vadd.f32 %v360, %v38
  %362 = vrot.lane.b32.xlu0 %v361, 64
  %v363 = vpop.permute.xlu0 %362
  %v364 = vmul.f32 %v361, %v363
  %365 = vrot.lane.b32.xlu0 %v364, 32
  %v366 = vpop.permute.xlu0 %365
  %v367 = vmul.f32 %v361, %v284
  %v368 = vadd.f32 %v367, %v366
  %v369 = vtanh.pop %v368
  %v370 = vmul.f32 %v363, %v369
  %371 = vmatprep.subr.mxu0 0.0
  %372 = vmatpush1.msra.mxu0 %v50
  %373 = vmatprep.subr.mxu0 0.0
  %374 = vmatpush1.msra.mxu0 %v51
  %375 = vmatprep.subr.mxu0 0.0
  %376 = vmatpush1.msra.mxu0 %v52
  %377 = vmatprep.subr.mxu0 0.0
  %378 = vmatpush1.msra.mxu0 %v53
  %379 = vmatprep.subr.mxu0 0.0
  %380 = vmatpush1.msra.mxu0 %v54
  %381 = vmatprep.subr.mxu0 0.0
  %382 = vmatpush1.msra.mxu0 %v55
  %383 = vmatprep.subr.mxu0 0.0
  %384 = vmatpush1.msra.mxu0 %v56
  %385 = vmatprep.subr.mxu0 0.0
  %386 = vmatpush1.msra.mxu0 %v57
  %387 = vmatprep.subr.mxu0 0.0
  %388 = vmatpush1.msra.mxu0 %v58
  %389 = vmatprep.subr.mxu0 0.0
  %390 = vmatpush1.msra.mxu0 %v59
  %391 = vmatprep.subr.mxu0 0.0
  %392 = vmatpush1.msra.mxu0 %v60
  %393 = vmatprep.subr.mxu0 0.0
  %394 = vmatpush1.msra.mxu0 %v61
  %395 = vmatprep.subr.mxu0 0.0
  %396 = vmatpush1.msra.mxu0 %v62
  %397 = vmatprep.subr.mxu0 0.0
  %398 = vmatpush1.msra.mxu0 %v63
  %399 = vmatprep.subr.mxu0 0.0
  %400 = vmatpush1.msra.mxu0 %v64
  %401 = vmatprep.subr.mxu0 0.0
  %402 = vmatpush1.msra.mxu0 %v65
  %403 = vmatprep.subr.mxu0 0.0
  %404 = vmatpush1.msra.mxu0 0.0
  %405 = vmatprep.subr.mxu0 0.0
  %406 = vmatpush1.msra.mxu0 0.0
  %407 = vmatprep.subr.mxu0 0.0
  %408 = vmatpush1.msra.mxu0 0.0
  %409 = vmatprep.subr.mxu0 0.0
  %410 = vmatpush1.msra.mxu0 0.0
  %411 = vmatprep.subr.mxu0 0.0
  %412 = vmatpush1.msra.mxu0 0.0
  %413 = vmatprep.subr.mxu0 0.0
  %414 = vmatpush1.msra.mxu0 0.0
  %415 = vmatprep.subr.mxu0 0.0
  %416 = vmatpush1.msra.mxu0 0.0
  %417 = vmatprep.subr.mxu0 0.0
  %418 = vmatpush1.msra.mxu0 0.0
  %419 = vmatprep.subr.mxu0 0.0
  %420 = vmatpush1.msra.mxu0 0.0
  %421 = vmatprep.subr.mxu0 0.0
  %422 = vmatpush1.msra.mxu0 0.0
  %423 = vmatprep.subr.mxu0 0.0
  %424 = vmatpush1.msra.mxu0 0.0
  %425 = vmatprep.subr.mxu0 0.0
  %426 = vmatpush1.msra.mxu0 0.0
  %427 = vmatprep.subr.mxu0 0.0
  %428 = vmatpush1.msra.mxu0 0.0
  %429 = vmatprep.subr.mxu0 0.0
  %430 = vmatpush1.msra.mxu0 0.0
  %431 = vmatprep.subr.mxu0 0.0
  %432 = vmatpush1.msra.mxu0 0.0
  %433 = vmatprep.subr.mxu0 0.0
  %434 = vmatpush1.msra.mxu0 0.0
  %435 = vmatprep.mubr.f32.mxu0 0.0
  %436 = vmatmul.mubr.f32.gmra.mrb[0].mxu0 %v370
  %v437 = vpop.f32.mrb[0].mxu0
  %v438 = vadd.f32 0.0, %v437
  %v439 = vpop.f32.mrb[0].mxu0
  %440 = vdwg.mxu0
  %v441 = vadd.f32 %v175, %v438
  %v442 = vmul.f32 %v441, %v37
  %v443 = vtanh.pop %v442
  %v444 = vmul.f32 %v443, %v37
  %v445 = vadd.f32 %v444, %v38
  %446 = vrot.lane.b32.xlu0 %v445, 64
  %v447 = vpop.permute.xlu0 %446
  %v448 = vmul.f32 %v445, %v447
  %449 = vrot.lane.b32.xlu0 %v448, 32
  %v450 = vpop.permute.xlu0 %449
  %v451 = vmul.f32 %v445, %v368
  %v452 = vadd.f32 %v451, %v450
  %v453 = vtanh.pop %v452
  %v454 = vmul.f32 %v447, %v453
  %455 = vmatprep.subr.mxu0 0.0
  %456 = vmatpush1.msra.mxu0 %v50
  %457 = vmatprep.subr.mxu0 0.0
  %458 = vmatpush1.msra.mxu0 %v51
  %459 = vmatprep.subr.mxu0 0.0
  %460 = vmatpush1.msra.mxu0 %v52
  %461 = vmatprep.subr.mxu0 0.0
  %462 = vmatpush1.msra.mxu0 %v53
  %463 = vmatprep.subr.mxu0 0.0
  %464 = vmatpush1.msra.mxu0 %v54
  %465 = vmatprep.subr.mxu0 0.0
  %466 = vmatpush1.msra.mxu0 %v55
  %467 = vmatprep.subr.mxu0 0.0
  %468 = vmatpush1.msra.mxu0 %v56
  %469 = vmatprep.subr.mxu0 0.0
  %470 = vmatpush1.msra.mxu0 %v57
  %471 = vmatprep.subr.mxu0 0.0
  %472 = vmatpush1.msra.mxu0 %v58
  %473 = vmatprep.subr.mxu0 0.0
  %474 = vmatpush1.msra.mxu0 %v59
  %475 = vmatprep.subr.mxu0 0.0
  %476 = vmatpush1.msra.mxu0 %v60
  %477 = vmatprep.subr.mxu0 0.0
  %478 = vmatpush1.msra.mxu0 %v61
  %479 = vmatprep.subr.mxu0 0.0
  %480 = vmatpush1.msra.mxu0 %v62
  %481 = vmatprep.subr.mxu0 0.0
  %482 = vmatpush1.msra.mxu0 %v63
  %483 = vmatprep.subr.mxu0 0.0
  %484 = vmatpush1.msra.mxu0 %v64
  %485 = vmatprep.subr.mxu0 0.0
  %486 = vmatpush1.msra.mxu0 %v65
  %487 = vmatprep.subr.mxu0 0.0
  %488 = vmatpush1.msra.mxu0 0.0
  %489 = vmatprep.subr.mxu0 0.0
  %490 = vmatpush1.msra.mxu0 0.0
  %491 = vmatprep.subr.mxu0 0.0
  %492 = vmatpush1.msra.mxu0 0.0
  %493 = vmatprep.subr.mxu0 0.0
  %494 = vmatpush1.msra.mxu0 0.0
  %495 = vmatprep.subr.mxu0 0.0
  %496 = vmatpush1.msra.mxu0 0.0
  %497 = vmatprep.subr.mxu0 0.0
  %498 = vmatpush1.msra.mxu0 0.0
  %499 = vmatprep.subr.mxu0 0.0
  %500 = vmatpush1.msra.mxu0 0.0
  %501 = vmatprep.subr.mxu0 0.0
  %502 = vmatpush1.msra.mxu0 0.0
  %503 = vmatprep.subr.mxu0 0.0
  %504 = vmatpush1.msra.mxu0 0.0
  %505 = vmatprep.subr.mxu0 0.0
  %506 = vmatpush1.msra.mxu0 0.0
  %507 = vmatprep.subr.mxu0 0.0
  %508 = vmatpush1.msra.mxu0 0.0
  %509 = vmatprep.subr.mxu0 0.0
  %510 = vmatpush1.msra.mxu0 0.0
  %511 = vmatprep.subr.mxu0 0.0
  %512 = vmatpush1.msra.mxu0 0.0
  %513 = vmatprep.subr.mxu0 0.0
  %514 = vmatpush1.msra.mxu0 0.0
  %515 = vmatprep.subr.mxu0 0.0
  %516 = vmatpush1.msra.mxu0 0.0
  %517 = vmatprep.subr.mxu0 0.0
  %518 = vmatpush1.msra.mxu0 0.0
  %519 = vmatprep.mubr.f32.mxu0 0.0
  %520 = vmatmul.mubr.f32.gmra.mrb[0].mxu0 %v454
  %v521 = vpop.f32.mrb[0].mxu0
  %v522 = vadd.f32 0.0, %v521
  %v523 = vpop.f32.mrb[0].mxu0
  %524 = vdwg.mxu0
  %v525 = vadd.f32 %v180, %v522
  %v526 = vmul.f32 %v525, %v37
  %v527 = vtanh.pop %v526
  %v528 = vmul.f32 %v527, %v37
  %v529 = vadd.f32 %v528, %v38
  %530 = vrot.lane.b32.xlu0 %v529, 64
  %v531 = vpop.permute.xlu0 %530
  %v532 = vmul.f32 %v529, %v531
  %533 = vrot.lane.b32.xlu0 %v532, 32
  %v534 = vpop.permute.xlu0 %533
  %v535 = vmul.f32 %v529, %v452
  %v536 = vadd.f32 %v535, %v534
  %v537 = vtanh.pop %v536
  %v538 = vmul.f32 %v531, %v537
  %539 = vmatprep.subr.mxu0 0.0
  %540 = vmatpush1.msra.mxu0 %v50
  %541 = vmatprep.subr.mxu0 0.0
  %542 = vmatpush1.msra.mxu0 %v51
  %543 = vmatprep.subr.mxu0 0.0
  %544 = vmatpush1.msra.mxu0 %v52
  %545 = vmatprep.subr.mxu0 0.0
  %546 = vmatpush1.msra.mxu0 %v53
  %547 = vmatprep.subr.mxu0 0.0
  %548 = vmatpush1.msra.mxu0 %v54
  %549 = vmatprep.subr.mxu0 0.0
  %550 = vmatpush1.msra.mxu0 %v55
  %551 = vmatprep.subr.mxu0 0.0
  %552 = vmatpush1.msra.mxu0 %v56
  %553 = vmatprep.subr.mxu0 0.0
  %554 = vmatpush1.msra.mxu0 %v57
  %555 = vmatprep.subr.mxu0 0.0
  %556 = vmatpush1.msra.mxu0 %v58
  %557 = vmatprep.subr.mxu0 0.0
  %558 = vmatpush1.msra.mxu0 %v59
  %559 = vmatprep.subr.mxu0 0.0
  %560 = vmatpush1.msra.mxu0 %v60
  %561 = vmatprep.subr.mxu0 0.0
  %562 = vmatpush1.msra.mxu0 %v61
  %563 = vmatprep.subr.mxu0 0.0
  %564 = vmatpush1.msra.mxu0 %v62
  %565 = vmatprep.subr.mxu0 0.0
  %566 = vmatpush1.msra.mxu0 %v63
  %567 = vmatprep.subr.mxu0 0.0
  %568 = vmatpush1.msra.mxu0 %v64
  %569 = vmatprep.subr.mxu0 0.0
  %570 = vmatpush1.msra.mxu0 %v65
  %571 = vmatprep.subr.mxu0 0.0
  %572 = vmatpush1.msra.mxu0 0.0
  %573 = vmatprep.subr.mxu0 0.0
  %574 = vmatpush1.msra.mxu0 0.0
  %575 = vmatprep.subr.mxu0 0.0
  %576 = vmatpush1.msra.mxu0 0.0
  %577 = vmatprep.subr.mxu0 0.0
  %578 = vmatpush1.msra.mxu0 0.0
  %579 = vmatprep.subr.mxu0 0.0
  %580 = vmatpush1.msra.mxu0 0.0
  %581 = vmatprep.subr.mxu0 0.0
  %582 = vmatpush1.msra.mxu0 0.0
  %583 = vmatprep.subr.mxu0 0.0
  %584 = vmatpush1.msra.mxu0 0.0
  %585 = vmatprep.subr.mxu0 0.0
  %586 = vmatpush1.msra.mxu0 0.0
  %587 = vmatprep.subr.mxu0 0.0
  %588 = vmatpush1.msra.mxu0 0.0
  %589 = vmatprep.subr.mxu0 0.0
  %590 = vmatpush1.msra.mxu0 0.0
  %591 = vmatprep.subr.mxu0 0.0
  %592 = vmatpush1.msra.mxu0 0.0
  %593 = vmatprep.subr.mxu0 0.0
  %594 = vmatpush1.msra.mxu0 0.0
  %595 = vmatprep.subr.mxu0 0.0
  %596 = vmatpush1.msra.mxu0 0.0
  %597 = vmatprep.subr.mxu0 0.0
  %598 = vmatpush1.msra.mxu0 0.0
  %599 = vmatprep.subr.mxu0 0.0
  %600 = vmatpush1.msra.mxu0 0.0
  %601 = vmatprep.subr.mxu0 0.0
  %602 = vmatpush1.msra.mxu0 0.0
  %603 = vmatprep.mubr.f32.mxu0 0.0
  %604 = vmatmul.mubr.f32.gmra.mrb[0].mxu0 %v538
  %v605 = vpop.f32.mrb[0].mxu0
  %v606 = vadd.f32 0.0, %v605
  %v607 = vpop.f32.mrb[0].mxu0
  %608 = vdwg.mxu0
  %v609 = vadd.f32 %v185, %v606
  %v610 = vmul.f32 %v609, %v37
  %v611 = vtanh.pop %v610
  %v612 = vmul.f32 %v611, %v37
  %v613 = vadd.f32 %v612, %v38
  %614 = vrot.lane.b32.xlu0 %v613, 64
  %v615 = vpop.permute.xlu0 %614
  %v616 = vmul.f32 %v613, %v615
  %617 = vrot.lane.b32.xlu0 %v616, 32
  %v618 = vpop.permute.xlu0 %617
  %v619 = vmul.f32 %v613, %v536
  %v620 = vadd.f32 %v619, %v618
  %v621 = vtanh.pop %v620
  %v622 = vmul.f32 %v615, %v621
  %623 = vmatprep.subr.mxu0 0.0
  %624 = vmatpush1.msra.mxu0 %v50
  %625 = vmatprep.subr.mxu0 0.0
  %626 = vmatpush1.msra.mxu0 %v51
  %627 = vmatprep.subr.mxu0 0.0
  %628 = vmatpush1.msra.mxu0 %v52
  %629 = vmatprep.subr.mxu0 0.0
  %630 = vmatpush1.msra.mxu0 %v53
  %631 = vmatprep.subr.mxu0 0.0
  %632 = vmatpush1.msra.mxu0 %v54
  %633 = vmatprep.subr.mxu0 0.0
  %634 = vmatpush1.msra.mxu0 %v55
  %635 = vmatprep.subr.mxu0 0.0
  %636 = vmatpush1.msra.mxu0 %v56
  %637 = vmatprep.subr.mxu0 0.0
  %638 = vmatpush1.msra.mxu0 %v57
  %639 = vmatprep.subr.mxu0 0.0
  %640 = vmatpush1.msra.mxu0 %v58
  %641 = vmatprep.subr.mxu0 0.0
  %642 = vmatpush1.msra.mxu0 %v59
  %643 = vmatprep.subr.mxu0 0.0
  %644 = vmatpush1.msra.mxu0 %v60
  %645 = vmatprep.subr.mxu0 0.0
  %646 = vmatpush1.msra.mxu0 %v61
  %647 = vmatprep.subr.mxu0 0.0
  %648 = vmatpush1.msra.mxu0 %v62
  %649 = vmatprep.subr.mxu0 0.0
  %650 = vmatpush1.msra.mxu0 %v63
  %651 = vmatprep.subr.mxu0 0.0
  %652 = vmatpush1.msra.mxu0 %v64
  %653 = vmatprep.subr.mxu0 0.0
  %654 = vmatpush1.msra.mxu0 %v65
  %655 = vmatprep.subr.mxu0 0.0
  %656 = vmatpush1.msra.mxu0 0.0
  %657 = vmatprep.subr.mxu0 0.0
  %658 = vmatpush1.msra.mxu0 0.0
  %659 = vmatprep.subr.mxu0 0.0
  %660 = vmatpush1.msra.mxu0 0.0
  %661 = vmatprep.subr.mxu0 0.0
  %662 = vmatpush1.msra.mxu0 0.0
  %663 = vmatprep.subr.mxu0 0.0
  %664 = vmatpush1.msra.mxu0 0.0
  %665 = vmatprep.subr.mxu0 0.0
  %666 = vmatpush1.msra.mxu0 0.0
  %667 = vmatprep.subr.mxu0 0.0
  %668 = vmatpush1.msra.mxu0 0.0
  %669 = vmatprep.subr.mxu0 0.0
  %670 = vmatpush1.msra.mxu0 0.0
  %671 = vmatprep.subr.mxu0 0.0
  %672 = vmatpush1.msra.mxu0 0.0
  %673 = vmatprep.subr.mxu0 0.0
  %674 = vmatpush1.msra.mxu0 0.0
  %675 = vmatprep.subr.mxu0 0.0
  %676 = vmatpush1.msra.mxu0 0.0
  %677 = vmatprep.subr.mxu0 0.0
  %678 = vmatpush1.msra.mxu0 0.0
  %679 = vmatprep.subr.mxu0 0.0
  %680 = vmatpush1.msra.mxu0 0.0
  %681 = vmatprep.subr.mxu0 0.0
  %682 = vmatpush1.msra.mxu0 0.0
  %683 = vmatprep.subr.mxu0 0.0
  %684 = vmatpush1.msra.mxu0 0.0
  %685 = vmatprep.subr.mxu0 0.0
  %686 = vmatpush1.msra.mxu0 0.0
  %687 = vmatprep.mubr.f32.mxu0 0.0
  %688 = vmatmul.mubr.f32.gmra.mrb[0].mxu0 %v622
  %v689 = vpop.f32.mrb[0].mxu0
  %v690 = vadd.f32 0.0, %v689
  %v691 = vpop.f32.mrb[0].mxu0
  %692 = vdwg.mxu0
  %v693 = vadd.f32 %v190, %v690
  %v694 = vmul.f32 %v693, %v37
  %v695 = vtanh.pop %v694
  %v696 = vmul.f32 %v695, %v37
  %v697 = vadd.f32 %v696, %v38
  %698 = vrot.lane.b32.xlu0 %v697, 64
  %v699 = vpop.permute.xlu0 %698
  %v700 = vmul.f32 %v697, %v699
  %701 = vrot.lane.b32.xlu0 %v700, 32
  %v702 = vpop.permute.xlu0 %701
  %v703 = vmul.f32 %v697, %v620
  %v704 = vadd.f32 %v703, %v702
  %v705 = vtanh.pop %v704
  %v706 = vmul.f32 %v699, %v705
  %707 = vmatprep.subr.mxu0 0.0
  %708 = vmatpush1.msra.mxu0 %v50
  %709 = vmatprep.subr.mxu0 0.0
  %710 = vmatpush1.msra.mxu0 %v51
  %711 = vmatprep.subr.mxu0 0.0
  %712 = vmatpush1.msra.mxu0 %v52
  %713 = vmatprep.subr.mxu0 0.0
  %714 = vmatpush1.msra.mxu0 %v53
  %715 = vmatprep.subr.mxu0 0.0
  %716 = vmatpush1.msra.mxu0 %v54
  %717 = vmatprep.subr.mxu0 0.0
  %718 = vmatpush1.msra.mxu0 %v55
  %719 = vmatprep.subr.mxu0 0.0
  %720 = vmatpush1.msra.mxu0 %v56
  %721 = vmatprep.subr.mxu0 0.0
  %722 = vmatpush1.msra.mxu0 %v57
  %723 = vmatprep.subr.mxu0 0.0
  %724 = vmatpush1.msra.mxu0 %v58
  %725 = vmatprep.subr.mxu0 0.0
  %726 = vmatpush1.msra.mxu0 %v59
  %727 = vmatprep.subr.mxu0 0.0
  %728 = vmatpush1.msra.mxu0 %v60
  %729 = vmatprep.subr.mxu0 0.0
  %730 = vmatpush1.msra.mxu0 %v61
  %731 = vmatprep.subr.mxu0 0.0
  %732 = vmatpush1.msra.mxu0 %v62
  %733 = vmatprep.subr.mxu0 0.0
  %734 = vmatpush1.msra.mxu0 %v63
  %735 = vmatprep.subr.mxu0 0.0
  %736 = vmatpush1.msra.mxu0 %v64
  %737 = vmatprep.subr.mxu0 0.0
  %738 = vmatpush1.msra.mxu0 %v65
  %739 = vmatprep.subr.mxu0 0.0
  %740 = vmatpush1.msra.mxu0 0.0
  %741 = vmatprep.subr.mxu0 0.0
  %742 = vmatpush1.msra.mxu0 0.0
  %743 = vmatprep.subr.mxu0 0.0
  %744 = vmatpush1.msra.mxu0 0.0
  %745 = vmatprep.subr.mxu0 0.0
  %746 = vmatpush1.msra.mxu0 0.0
  %747 = vmatprep.subr.mxu0 0.0
  %748 = vmatpush1.msra.mxu0 0.0
  %749 = vmatprep.subr.mxu0 0.0
  %750 = vmatpush1.msra.mxu0 0.0
  %751 = vmatprep.subr.mxu0 0.0
  %752 = vmatpush1.msra.mxu0 0.0
  %753 = vmatprep.subr.mxu0 0.0
  %754 = vmatpush1.msra.mxu0 0.0
  %755 = vmatprep.subr.mxu0 0.0
  %756 = vmatpush1.msra.mxu0 0.0
  %757 = vmatprep.subr.mxu0 0.0
  %758 = vmatpush1.msra.mxu0 0.0
  %759 = vmatprep.subr.mxu0 0.0
  %760 = vmatpush1.msra.mxu0 0.0
  %761 = vmatprep.subr.mxu0 0.0
  %762 = vmatpush1.msra.mxu0 0.0
  %763 = vmatprep.subr.mxu0 0.0
  %764 = vmatpush1.msra.mxu0 0.0
  %765 = vmatprep.subr.mxu0 0.0
  %766 = vmatpush1.msra.mxu0 0.0
  %767 = vmatprep.subr.mxu0 0.0
  %768 = vmatpush1.msra.mxu0 0.0
  %769 = vmatprep.subr.mxu0 0.0
  %770 = vmatpush1.msra.mxu0 0.0
  %771 = vmatprep.mubr.f32.mxu0 0.0
  %772 = vmatmul.mubr.f32.gmra.mrb[0].mxu0 %v706
  %v773 = vpop.f32.mrb[0].mxu0
  %v774 = vadd.f32 0.0, %v773
  %v775 = vpop.f32.mrb[0].mxu0
  %776 = vdwg.mxu0
  %v777 = vadd.f32 %v195, %v774
  %v778 = vmul.f32 %v777, %v37
  %v779 = vtanh.pop %v778
  %v780 = vmul.f32 %v779, %v37
  %v781 = vadd.f32 %v780, %v38
  %782 = vrot.lane.b32.xlu0 %v781, 64
  %v783 = vpop.permute.xlu0 %782
  %v784 = vmul.f32 %v781, %v783
  %785 = vrot.lane.b32.xlu0 %v784, 32
  %v786 = vpop.permute.xlu0 %785
  %v787 = vmul.f32 %v781, %v704
  %v788 = vadd.f32 %v787, %v786
  %v789 = vtanh.pop %v788
  %v790 = vmul.f32 %v783, %v789
  %791 = vmatprep.subr.mxu0 0.0
  %792 = vmatpush1.msra.mxu0 %v50
  %793 = vmatprep.subr.mxu0 0.0
  %794 = vmatpush1.msra.mxu0 %v51
  %795 = vmatprep.subr.mxu0 0.0
  %796 = vmatpush1.msra.mxu0 %v52
  %797 = vmatprep.subr.mxu0 0.0
  %798 = vmatpush1.msra.mxu0 %v53
  %799 = vmatprep.subr.mxu0 0.0
  %800 = vmatpush1.msra.mxu0 %v54
  %801 = vmatprep.subr.mxu0 0.0
  %802 = vmatpush1.msra.mxu0 %v55
  %803 = vmatprep.subr.mxu0 0.0
  %804 = vmatpush1.msra.mxu0 %v56
  %805 = vmatprep.subr.mxu0 0.0
  %806 = vmatpush1.msra.mxu0 %v57
  %807 = vmatprep.subr.mxu0 0.0
  %808 = vmatpush1.msra.mxu0 %v58
  %809 = vmatprep.subr.mxu0 0.0
  %810 = vmatpush1.msra.mxu0 %v59
  %811 = vmatprep.subr.mxu0 0.0
  %812 = vmatpush1.msra.mxu0 %v60
  %813 = vmatprep.subr.mxu0 0.0
  %814 = vmatpush1.msra.mxu0 %v61
  %815 = vmatprep.subr.mxu0 0.0
  %816 = vmatpush1.msra.mxu0 %v62
  %817 = vmatprep.subr.mxu0 0.0
  %818 = vmatpush1.msra.mxu0 %v63
  %819 = vmatprep.subr.mxu0 0.0
  %820 = vmatpush1.msra.mxu0 %v64
  %821 = vmatprep.subr.mxu0 0.0
  %822 = vmatpush1.msra.mxu0 %v65
  %823 = vmatprep.subr.mxu0 0.0
  %824 = vmatpush1.msra.mxu0 0.0
  %825 = vmatprep.subr.mxu0 0.0
  %826 = vmatpush1.msra.mxu0 0.0
  %827 = vmatprep.subr.mxu0 0.0
  %828 = vmatpush1.msra.mxu0 0.0
  %829 = vmatprep.subr.mxu0 0.0
  %830 = vmatpush1.msra.mxu0 0.0
  %831 = vmatprep.subr.mxu0 0.0
  %832 = vmatpush1.msra.mxu0 0.0
  %833 = vmatprep.subr.mxu0 0.0
  %834 = vmatpush1.msra.mxu0 0.0
  %835 = vmatprep.subr.mxu0 0.0
  %836 = vmatpush1.msra.mxu0 0.0
  %837 = vmatprep.subr.mxu0 0.0
  %838 = vmatpush1.msra.mxu0 0.0
  %839 = vmatprep.subr.mxu0 0.0
  %840 = vmatpush1.msra.mxu0 0.0
  %841 = vmatprep.subr.mxu0 0.0
  %842 = vmatpush1.msra.mxu0 0.0
  %843 = vmatprep.subr.mxu0 0.0
  %844 = vmatpush1.msra.mxu0 0.0
  %845 = vmatprep.subr.mxu0 0.0
  %846 = vmatpush1.msra.mxu0 0.0
  %847 = vmatprep.subr.mxu0 0.0
  %848 = vmatpush1.msra.mxu0 0.0
  %849 = vmatprep.subr.mxu0 0.0
  %850 = vmatpush1.msra.mxu0 0.0
  %851 = vmatprep.subr.mxu0 0.0
  %852 = vmatpush1.msra.mxu0 0.0
  %853 = vmatprep.subr.mxu0 0.0
  %854 = vmatpush1.msra.mxu0 0.0
  %855 = vmatprep.mubr.f32.mxu0 0.0
  %856 = vmatmul.mubr.f32.gmra.mrb[0].mxu0 %v790
  %v857 = vpop.f32.mrb[0].mxu0
  %v858 = vadd.f32 0.0, %v857
  %v859 = vpop.f32.mrb[0].mxu0
  %860 = vdwg.mxu0
  %v861 = vadd.f32 %v200, %v858
  %v862 = vmul.f32 %v861, %v37
  %v863 = vtanh.pop %v862
  %v864 = vmul.f32 %v863, %v37
  %v865 = vadd.f32 %v864, %v38
  %866 = vrot.lane.b32.xlu0 %v865, 64
  %v867 = vpop.permute.xlu0 %866
  %v868 = vmul.f32 %v865, %v867
  %869 = vrot.lane.b32.xlu0 %v868, 32
  %v870 = vpop.permute.xlu0 %869
  %v871 = vmul.f32 %v865, %v788
  %v872 = vadd.f32 %v871, %v870
  %v873 = vtanh.pop %v872
  %v874 = vmul.f32 %v867, %v873
  %v875 = vld [vmem:[%s4] sm:$0xff]
  %v876 = vld [vmem:[%s4 + $0x8] sm:$0xff]
  %v877 = vld [vmem:[%s4 + $0x10] sm:$0xff]
  %v878 = vld [vmem:[%s4 + $0x18] sm:$0xff]
  %v879 = vld [vmem:[%s4 + $0x20] sm:$0xff]
  %v880 = vld [vmem:[%s4 + $0x28] sm:$0xff]
  %v881 = vld [vmem:[%s4 + $0x30] sm:$0xff]
  %v882 = vld [vmem:[%s4 + $0x38] sm:$0xff]
  %v883 = vld [vmem:[%s4 + $0x40] sm:$0xff]
  %v884 = vld [vmem:[%s4 + $0x48] sm:$0xff]
  %v885 = vld [vmem:[%s4 + $0x50] sm:$0xff]
  %v886 = vld [vmem:[%s4 + $0x58] sm:$0xff]
  %v887 = vld [vmem:[%s4 + $0x60] sm:$0xff]
  %v888 = vld [vmem:[%s4 + $0x68] sm:$0xff]
  %v889 = vld [vmem:[%s4 + $0x70] sm:$0xff]
  %v890 = vld [vmem:[%s4 + $0x78] sm:$0xff]
  %v891 = vld [vmem:[%s5] sm:$0xff]
  %v892 = vld [vmem:[%s5 + $0x8] sm:$0xff]
  %v893 = vld [vmem:[%s5 + $0x10] sm:$0xff]
  %v894 = vld [vmem:[%s5 + $0x18] sm:$0xff]
  %v895 = vld [vmem:[%s5 + $0x20] sm:$0xff]
  %v896 = vld [vmem:[%s5 + $0x28] sm:$0xff]
  %v897 = vld [vmem:[%s5 + $0x30] sm:$0xff]
  %v898 = vld [vmem:[%s5 + $0x38] sm:$0xff]
  %v899 = vld [vmem:[%s5 + $0x40] sm:$0xff]
  %v900 = vld [vmem:[%s5 + $0x48] sm:$0xff]
  %v901 = vld [vmem:[%s5 + $0x50] sm:$0xff]
  %v902 = vld [vmem:[%s5 + $0x58] sm:$0xff]
  %v903 = vld [vmem:[%s5 + $0x60] sm:$0xff]
  %v904 = vld [vmem:[%s5 + $0x68] sm:$0xff]
  %v905 = vld [vmem:[%s5 + $0x70] sm:$0xff]
  %v906 = vld [vmem:[%s5 + $0x78] sm:$0xff]
  %v907 = vld [vmem:[%s6] sm:$0x1]
  %v909 = vlaneseq
  %v910 = vshrl.u32 %v909, 7
  %v911 = vsub.s32 0, %v910
  %v912 = vrot.slane %v907, %v911
  %914 = vmatprep.subr.mxu0 0.0
  %915 = vmatpush1.msra.mxu0 %v875
  %916 = vmatprep.subr.mxu0 0.0
  %917 = vmatpush1.msra.mxu0 %v876
  %918 = vmatprep.subr.mxu0 0.0
  %919 = vmatpush1.msra.mxu0 %v877
  %920 = vmatprep.subr.mxu0 0.0
  %921 = vmatpush1.msra.mxu0 %v878
  %922 = vmatprep.subr.mxu0 0.0
  %923 = vmatpush1.msra.mxu0 %v879
  %924 = vmatprep.subr.mxu0 0.0
  %925 = vmatpush1.msra.mxu0 %v880
  %926 = vmatprep.subr.mxu0 0.0
  %927 = vmatpush1.msra.mxu0 %v881
  %928 = vmatprep.subr.mxu0 0.0
  %929 = vmatpush1.msra.mxu0 %v882
  %930 = vmatprep.subr.mxu0 0.0
  %931 = vmatpush1.msra.mxu0 %v883
  %932 = vmatprep.subr.mxu0 0.0
  %933 = vmatpush1.msra.mxu0 %v884
  %934 = vmatprep.subr.mxu0 0.0
  %935 = vmatpush1.msra.mxu0 %v885
  %936 = vmatprep.subr.mxu0 0.0
  %937 = vmatpush1.msra.mxu0 %v886
  %938 = vmatprep.subr.mxu0 0.0
  %939 = vmatpush1.msra.mxu0 %v887
  %940 = vmatprep.subr.mxu0 0.0
  %941 = vmatpush1.msra.mxu0 %v888
  %942 = vmatprep.subr.mxu0 0.0
  %943 = vmatpush1.msra.mxu0 %v889
  %944 = vmatprep.subr.mxu0 0.0
  %945 = vmatpush1.msra.mxu0 %v890
  %946 = vmatprep.subr.mxu0 0.0
  %947 = vmatpush1.msra.mxu0 0.0
  %948 = vmatprep.subr.mxu0 0.0
  %949 = vmatpush1.msra.mxu0 0.0
  %950 = vmatprep.subr.mxu0 0.0
  %951 = vmatpush1.msra.mxu0 0.0
  %952 = vmatprep.subr.mxu0 0.0
  %953 = vmatpush1.msra.mxu0 0.0
  %954 = vmatprep.subr.mxu0 0.0
  %955 = vmatpush1.msra.mxu0 0.0
  %956 = vmatprep.subr.mxu0 0.0
  %957 = vmatpush1.msra.mxu0 0.0
  %958 = vmatprep.subr.mxu0 0.0
  %959 = vmatpush1.msra.mxu0 0.0
  %960 = vmatprep.subr.mxu0 0.0
  %961 = vmatpush1.msra.mxu0 0.0
  %962 = vmatprep.subr.mxu0 0.0
  %963 = vmatpush1.msra.mxu0 0.0
  %964 = vmatprep.subr.mxu0 0.0
  %965 = vmatpush1.msra.mxu0 0.0
  %966 = vmatprep.subr.mxu0 0.0
  %967 = vmatpush1.msra.mxu0 0.0
  %968 = vmatprep.subr.mxu0 0.0
  %969 = vmatpush1.msra.mxu0 0.0
  %970 = vmatprep.subr.mxu0 0.0
  %971 = vmatpush1.msra.mxu0 0.0
  %972 = vmatprep.subr.mxu0 0.0
  %973 = vmatpush1.msra.mxu0 0.0
  %974 = vmatprep.subr.mxu0 0.0
  %975 = vmatpush1.msra.mxu0 0.0
  %976 = vmatprep.subr.mxu0 0.0
  %977 = vmatpush1.msra.mxu0 0.0
  %978 = vmatprep.mubr.f32.mxu0 0.0
  %979 = vmatmul.mubr.f32.gmra.mrb[0].mxu0 %v286
  %v980 = vpop.f32.mrb[0].mxu0
  %v981 = vadd.f32 %v912, %v980
  %v982 = vpop.f32.mrb[0].mxu0
  %983 = vmatprep.mubr.f32.mxu0 0.0
  %984 = vmatmul.mubr.f32.gmra.mrb[0].mxu0 %v370
  %v985 = vpop.f32.mrb[0].mxu0
  %v986 = vadd.f32 %v912, %v985
  %v987 = vpop.f32.mrb[0].mxu0
  %988 = vmatprep.mubr.f32.mxu0 0.0
  %989 = vmatmul.mubr.f32.gmra.mrb[0].mxu0 %v454
  %v990 = vpop.f32.mrb[0].mxu0
  %v991 = vadd.f32 %v912, %v990
  %v992 = vpop.f32.mrb[0].mxu0
  %993 = vmatprep.mubr.f32.mxu0 0.0
  %994 = vmatmul.mubr.f32.gmra.mrb[0].mxu0 %v538
  %v995 = vpop.f32.mrb[0].mxu0
  %v996 = vadd.f32 %v912, %v995
  %v997 = vpop.f32.mrb[0].mxu0
  %998 = vmatprep.mubr.f32.mxu0 0.0
  %999 = vmatmul.mubr.f32.gmra.mrb[0].mxu0 %v622
  %v1000 = vpop.f32.mrb[0].mxu0
  %v1001 = vadd.f32 %v912, %v1000
  %v1002 = vpop.f32.mrb[0].mxu0
  %1003 = vmatprep.mubr.f32.mxu0 0.0
  %1004 = vmatmul.mubr.f32.gmra.mrb[0].mxu0 %v706
  %v1005 = vpop.f32.mrb[0].mxu0
  %v1006 = vadd.f32 %v912, %v1005
  %v1007 = vpop.f32.mrb[0].mxu0
  %1008 = vmatprep.mubr.f32.mxu0 0.0
  %1009 = vmatmul.mubr.f32.gmra.mrb[0].mxu0 %v790
  %v1010 = vpop.f32.mrb[0].mxu0
  %v1011 = vadd.f32 %v912, %v1010
  %v1012 = vpop.f32.mrb[0].mxu0
  %1013 = vmatprep.mubr.f32.mxu0 0.0
  %1014 = vmatmul.mubr.f32.gmra.mrb[0].mxu0 %v874
  %v1015 = vpop.f32.mrb[0].mxu0
  %v1016 = vadd.f32 %v912, %v1015
  %v1017 = vpop.f32.mrb[0].mxu0
  %1018 = vdwg.mxu0
  %1019 = vmatprep.subr.mxu0 0.0
  %1020 = vmatpush1.msra.mxu0 %v891
  %1021 = vmatprep.subr.mxu0 0.0
  %1022 = vmatpush1.msra.mxu0 %v892
  %1023 = vmatprep.subr.mxu0 0.0
  %1024 = vmatpush1.msra.mxu0 %v893
  %1025 = vmatprep.subr.mxu0 0.0
  %1026 = vmatpush1.msra.mxu0 %v894
  %1027 = vmatprep.subr.mxu0 0.0
  %1028 = vmatpush1.msra.mxu0 %v895
  %1029 = vmatprep.subr.mxu0 0.0
  %1030 = vmatpush1.msra.mxu0 %v896
  %1031 = vmatprep.subr.mxu0 0.0
  %1032 = vmatpush1.msra.mxu0 %v897
  %1033 = vmatprep.subr.mxu0 0.0
  %1034 = vmatpush1.msra.mxu0 %v898
  %1035 = vmatprep.subr.mxu0 0.0
  %1036 = vmatpush1.msra.mxu0 %v899
  %1037 = vmatprep.subr.mxu0 0.0
  %1038 = vmatpush1.msra.mxu0 %v900
  %1039 = vmatprep.subr.mxu0 0.0
  %1040 = vmatpush1.msra.mxu0 %v901
  %1041 = vmatprep.subr.mxu0 0.0
  %1042 = vmatpush1.msra.mxu0 %v902
  %1043 = vmatprep.subr.mxu0 0.0
  %1044 = vmatpush1.msra.mxu0 %v903
  %1045 = vmatprep.subr.mxu0 0.0
  %1046 = vmatpush1.msra.mxu0 %v904
  %1047 = vmatprep.subr.mxu0 0.0
  %1048 = vmatpush1.msra.mxu0 %v905
  %1049 = vmatprep.subr.mxu0 0.0
  %1050 = vmatpush1.msra.mxu0 %v906
  %1051 = vmatprep.subr.mxu0 0.0
  %1052 = vmatpush1.msra.mxu0 0.0
  %1053 = vmatprep.subr.mxu0 0.0
  %1054 = vmatpush1.msra.mxu0 0.0
  %1055 = vmatprep.subr.mxu0 0.0
  %1056 = vmatpush1.msra.mxu0 0.0
  %1057 = vmatprep.subr.mxu0 0.0
  %1058 = vmatpush1.msra.mxu0 0.0
  %1059 = vmatprep.subr.mxu0 0.0
  %1060 = vmatpush1.msra.mxu0 0.0
  %1061 = vmatprep.subr.mxu0 0.0
  %1062 = vmatpush1.msra.mxu0 0.0
  %1063 = vmatprep.subr.mxu0 0.0
  %1064 = vmatpush1.msra.mxu0 0.0
  %1065 = vmatprep.subr.mxu0 0.0
  %1066 = vmatpush1.msra.mxu0 0.0
  %1067 = vmatprep.subr.mxu0 0.0
  %1068 = vmatpush1.msra.mxu0 0.0
  %1069 = vmatprep.subr.mxu0 0.0
  %1070 = vmatpush1.msra.mxu0 0.0
  %1071 = vmatprep.subr.mxu0 0.0
  %1072 = vmatpush1.msra.mxu0 0.0
  %1073 = vmatprep.subr.mxu0 0.0
  %1074 = vmatpush1.msra.mxu0 0.0
  %1075 = vmatprep.subr.mxu0 0.0
  %1076 = vmatpush1.msra.mxu0 0.0
  %1077 = vmatprep.subr.mxu0 0.0
  %1078 = vmatpush1.msra.mxu0 0.0
  %1079 = vmatprep.subr.mxu0 0.0
  %1080 = vmatpush1.msra.mxu0 0.0
  %1081 = vmatprep.subr.mxu0 0.0
  %1082 = vmatpush1.msra.mxu0 0.0
  %1083 = vmatprep.mubr.f32.mxu0 0.0
  %1084 = vmatmul.mubr.f32.gmra.mrb[0].mxu0 0.0
  %v1085 = vpop.f32.mrb[0].mxu0
  %v1086 = vadd.f32 0.0, %v1085
  %v1087 = vpop.f32.mrb[0].mxu0
  %1088 = vdwg.mxu0
  %v1089 = vadd.f32 %v981, %v1086
  %v1090 = vmul.f32 %v1089, %v37
  %v1091 = vtanh.pop %v1090
  %v1092 = vmul.f32 %v1091, %v37
  %v1093 = vadd.f32 %v1092, %v38
  %1094 = vrot.lane.b32.xlu0 %v1093, 64
  %v1095 = vpop.permute.xlu0 %1094
  %v1096 = vmul.f32 %v1093, %v1095
  %1097 = vrot.lane.b32.xlu0 %v1096, 32
  %v1098 = vpop.permute.xlu0 %1097
  %v1099 = vmul.f32 %v1093, 0.0
  %v1100 = vadd.f32 %v1099, %v1098
  %v1101 = vtanh.pop %v1100
  %v1102 = vmul.f32 %v1095, %v1101
  %1103 = vmatprep.subr.mxu0 0.0
  %1104 = vmatpush1.msra.mxu0 %v891
  %1105 = vmatprep.subr.mxu0 0.0
  %1106 = vmatpush1.msra.mxu0 %v892
  %1107 = vmatprep.subr.mxu0 0.0
  %1108 = vmatpush1.msra.mxu0 %v893
  %1109 = vmatprep.subr.mxu0 0.0
  %1110 = vmatpush1.msra.mxu0 %v894
  %1111 = vmatprep.subr.mxu0 0.0
  %1112 = vmatpush1.msra.mxu0 %v895
  %1113 = vmatprep.subr.mxu0 0.0
  %1114 = vmatpush1.msra.mxu0 %v896
  %1115 = vmatprep.subr.mxu0 0.0
  %1116 = vmatpush1.msra.mxu0 %v897
  %1117 = vmatprep.subr.mxu0 0.0
  %1118 = vmatpush1.msra.mxu0 %v898
  %1119 = vmatprep.subr.mxu0 0.0
  %1120 = vmatpush1.msra.mxu0 %v899
  %1121 = vmatprep.subr.mxu0 0.0
  %1122 = vmatpush1.msra.mxu0 %v900
  %1123 = vmatprep.subr.mxu0 0.0
  %1124 = vmatpush1.msra.mxu0 %v901
  %1125 = vmatprep.subr.mxu0 0.0
  %1126 = vmatpush1.msra.mxu0 %v902
  %1127 = vmatprep.subr.mxu0 0.0
  %1128 = vmatpush1.msra.mxu0 %v903
  %1129 = vmatprep.subr.mxu0 0.0
  %1130 = vmatpush1.msra.mxu0 %v904
  %1131 = vmatprep.subr.mxu0 0.0
  %1132 = vmatpush1.msra.mxu0 %v905
  %1133 = vmatprep.subr.mxu0 0.0
  %1134 = vmatpush1.msra.mxu0 %v906
  %1135 = vmatprep.subr.mxu0 0.0
  %1136 = vmatpush1.msra.mxu0 0.0
  %1137 = vmatprep.subr.mxu0 0.0
  %1138 = vmatpush1.msra.mxu0 0.0
  %1139 = vmatprep.subr.mxu0 0.0
  %1140 = vmatpush1.msra.mxu0 0.0
  %1141 = vmatprep.subr.mxu0 0.0
  %1142 = vmatpush1.msra.mxu0 0.0
  %1143 = vmatprep.subr.mxu0 0.0
  %1144 = vmatpush1.msra.mxu0 0.0
  %1145 = vmatprep.subr.mxu0 0.0
  %1146 = vmatpush1.msra.mxu0 0.0
  %1147 = vmatprep.subr.mxu0 0.0
  %1148 = vmatpush1.msra.mxu0 0.0
  %1149 = vmatprep.subr.mxu0 0.0
  %1150 = vmatpush1.msra.mxu0 0.0
  %1151 = vmatprep.subr.mxu0 0.0
  %1152 = vmatpush1.msra.mxu0 0.0
  %1153 = vmatprep.subr.mxu0 0.0
  %1154 = vmatpush1.msra.mxu0 0.0
  %1155 = vmatprep.subr.mxu0 0.0
  %1156 = vmatpush1.msra.mxu0 0.0
  %1157 = vmatprep.subr.mxu0 0.0
  %1158 = vmatpush1.msra.mxu0 0.0
  %1159 = vmatprep.subr.mxu0 0.0
  %1160 = vmatpush1.msra.mxu0 0.0
  %1161 = vmatprep.subr.mxu0 0.0
  %1162 = vmatpush1.msra.mxu0 0.0
  %1163 = vmatprep.subr.mxu0 0.0
  %1164 = vmatpush1.msra.mxu0 0.0
  %1165 = vmatprep.subr.mxu0 0.0
  %1166 = vmatpush1.msra.mxu0 0.0
  %1167 = vmatprep.mubr.f32.mxu0 0.0
  %1168 = vmatmul.mubr.f32.gmra.mrb[0].mxu0 %v1102
  %v1169 = vpop.f32.mrb[0].mxu0
  %v1170 = vadd.f32 0.0, %v1169
  %v1171 = vpop.f32.mrb[0].mxu0
  %1172 = vdwg.mxu0
  %v1173 = vadd.f32 %v986, %v1170
  %v1174 = vmul.f32 %v1173, %v37
  %v1175 = vtanh.pop %v1174
  %v1176 = vmul.f32 %v1175, %v37
  %v1177 = vadd.f32 %v1176, %v38
  %1178 = vrot.lane.b32.xlu0 %v1177, 64
  %v1179 = vpop.permute.xlu0 %1178
  %v1180 = vmul.f32 %v1177, %v1179
  %1181 = vrot.lane.b32.xlu0 %v1180, 32
  %v1182 = vpop.permute.xlu0 %1181
  %v1183 = vmul.f32 %v1177, %v1100
  %v1184 = vadd.f32 %v1183, %v1182
  %v1185 = vtanh.pop %v1184
  %v1186 = vmul.f32 %v1179, %v1185
  %1187 = vmatprep.subr.mxu0 0.0
  %1188 = vmatpush1.msra.mxu0 %v891
  %1189 = vmatprep.subr.mxu0 0.0
  %1190 = vmatpush1.msra.mxu0 %v892
  %1191 = vmatprep.subr.mxu0 0.0
  %1192 = vmatpush1.msra.mxu0 %v893
  %1193 = vmatprep.subr.mxu0 0.0
  %1194 = vmatpush1.msra.mxu0 %v894
  %1195 = vmatprep.subr.mxu0 0.0
  %1196 = vmatpush1.msra.mxu0 %v895
  %1197 = vmatprep.subr.mxu0 0.0
  %1198 = vmatpush1.msra.mxu0 %v896
  %1199 = vmatprep.subr.mxu0 0.0
  %1200 = vmatpush1.msra.mxu0 %v897
  %1201 = vmatprep.subr.mxu0 0.0
  %1202 = vmatpush1.msra.mxu0 %v898
  %1203 = vmatprep.subr.mxu0 0.0
  %1204 = vmatpush1.msra.mxu0 %v899
  %1205 = vmatprep.subr.mxu0 0.0
  %1206 = vmatpush1.msra.mxu0 %v900
  %1207 = vmatprep.subr.mxu0 0.0
  %1208 = vmatpush1.msra.mxu0 %v901
  %1209 = vmatprep.subr.mxu0 0.0
  %1210 = vmatpush1.msra.mxu0 %v902
  %1211 = vmatprep.subr.mxu0 0.0
  %1212 = vmatpush1.msra.mxu0 %v903
  %1213 = vmatprep.subr.mxu0 0.0
  %1214 = vmatpush1.msra.mxu0 %v904
  %1215 = vmatprep.subr.mxu0 0.0
  %1216 = vmatpush1.msra.mxu0 %v905
  %1217 = vmatprep.subr.mxu0 0.0
  %1218 = vmatpush1.msra.mxu0 %v906
  %1219 = vmatprep.subr.mxu0 0.0
  %1220 = vmatpush1.msra.mxu0 0.0
  %1221 = vmatprep.subr.mxu0 0.0
  %1222 = vmatpush1.msra.mxu0 0.0
  %1223 = vmatprep.subr.mxu0 0.0
  %1224 = vmatpush1.msra.mxu0 0.0
  %1225 = vmatprep.subr.mxu0 0.0
  %1226 = vmatpush1.msra.mxu0 0.0
  %1227 = vmatprep.subr.mxu0 0.0
  %1228 = vmatpush1.msra.mxu0 0.0
  %1229 = vmatprep.subr.mxu0 0.0
  %1230 = vmatpush1.msra.mxu0 0.0
  %1231 = vmatprep.subr.mxu0 0.0
  %1232 = vmatpush1.msra.mxu0 0.0
  %1233 = vmatprep.subr.mxu0 0.0
  %1234 = vmatpush1.msra.mxu0 0.0
  %1235 = vmatprep.subr.mxu0 0.0
  %1236 = vmatpush1.msra.mxu0 0.0
  %1237 = vmatprep.subr.mxu0 0.0
  %1238 = vmatpush1.msra.mxu0 0.0
  %1239 = vmatprep.subr.mxu0 0.0
  %1240 = vmatpush1.msra.mxu0 0.0
  %1241 = vmatprep.subr.mxu0 0.0
  %1242 = vmatpush1.msra.mxu0 0.0
  %1243 = vmatprep.subr.mxu0 0.0
  %1244 = vmatpush1.msra.mxu0 0.0
  %1245 = vmatprep.subr.mxu0 0.0
  %1246 = vmatpush1.msra.mxu0 0.0
  %1247 = vmatprep.subr.mxu0 0.0
  %1248 = vmatpush1.msra.mxu0 0.0
  %1249 = vmatprep.subr.mxu0 0.0
  %1250 = vmatpush1.msra.mxu0 0.0
  %1251 = vmatprep.mubr.f32.mxu0 0.0
  %1252 = vmatmul.mubr.f32.gmra.mrb[0].mxu0 %v1186
  %v1253 = vpop.f32.mrb[0].mxu0
  %v1254 = vadd.f32 0.0, %v1253
  %v1255 = vpop.f32.mrb[0].mxu0
  %1256 = vdwg.mxu0
  %v1257 = vadd.f32 %v991, %v1254
  %v1258 = vmul.f32 %v1257, %v37
  %v1259 = vtanh.pop %v1258
  %v1260 = vmul.f32 %v1259, %v37
  %v1261 = vadd.f32 %v1260, %v38
  %1262 = vrot.lane.b32.xlu0 %v1261, 64
  %v1263 = vpop.permute.xlu0 %1262
  %v1264 = vmul.f32 %v1261, %v1263
  %1265 = vrot.lane.b32.xlu0 %v1264, 32
  %v1266 = vpop.permute.xlu0 %1265
  %v1267 = vmul.f32 %v1261, %v1184
  %v1268 = vadd.f32 %v1267, %v1266
  %v1269 = vtanh.pop %v1268
  %v1270 = vmul.f32 %v1263, %v1269
  %1271 = vmatprep.subr.mxu0 0.0
  %1272 = vmatpush1.msra.mxu0 %v891
  %1273 = vmatprep.subr.mxu0 0.0
  %1274 = vmatpush1.msra.mxu0 %v892
  %1275 = vmatprep.subr.mxu0 0.0
  %1276 = vmatpush1.msra.mxu0 %v893
  %1277 = vmatprep.subr.mxu0 0.0
  %1278 = vmatpush1.msra.mxu0 %v894
  %1279 = vmatprep.subr.mxu0 0.0
  %1280 = vmatpush1.msra.mxu0 %v895
  %1281 = vmatprep.subr.mxu0 0.0
  %1282 = vmatpush1.msra.mxu0 %v896
  %1283 = vmatprep.subr.mxu0 0.0
  %1284 = vmatpush1.msra.mxu0 %v897
  %1285 = vmatprep.subr.mxu0 0.0
  %1286 = vmatpush1.msra.mxu0 %v898
  %1287 = vmatprep.subr.mxu0 0.0
  %1288 = vmatpush1.msra.mxu0 %v899
  %1289 = vmatprep.subr.mxu0 0.0
  %1290 = vmatpush1.msra.mxu0 %v900
  %1291 = vmatprep.subr.mxu0 0.0
  %1292 = vmatpush1.msra.mxu0 %v901
  %1293 = vmatprep.subr.mxu0 0.0
  %1294 = vmatpush1.msra.mxu0 %v902
  %1295 = vmatprep.subr.mxu0 0.0
  %1296 = vmatpush1.msra.mxu0 %v903
  %1297 = vmatprep.subr.mxu0 0.0
  %1298 = vmatpush1.msra.mxu0 %v904
  %1299 = vmatprep.subr.mxu0 0.0
  %1300 = vmatpush1.msra.mxu0 %v905
  %1301 = vmatprep.subr.mxu0 0.0
  %1302 = vmatpush1.msra.mxu0 %v906
  %1303 = vmatprep.subr.mxu0 0.0
  %1304 = vmatpush1.msra.mxu0 0.0
  %1305 = vmatprep.subr.mxu0 0.0
  %1306 = vmatpush1.msra.mxu0 0.0
  %1307 = vmatprep.subr.mxu0 0.0
  %1308 = vmatpush1.msra.mxu0 0.0
  %1309 = vmatprep.subr.mxu0 0.0
  %1310 = vmatpush1.msra.mxu0 0.0
  %1311 = vmatprep.subr.mxu0 0.0
  %1312 = vmatpush1.msra.mxu0 0.0
  %1313 = vmatprep.subr.mxu0 0.0
  %1314 = vmatpush1.msra.mxu0 0.0
  %1315 = vmatprep.subr.mxu0 0.0
  %1316 = vmatpush1.msra.mxu0 0.0
  %1317 = vmatprep.subr.mxu0 0.0
  %1318 = vmatpush1.msra.mxu0 0.0
  %1319 = vmatprep.subr.mxu0 0.0
  %1320 = vmatpush1.msra.mxu0 0.0
  %1321 = vmatprep.subr.mxu0 0.0
  %1322 = vmatpush1.msra.mxu0 0.0
  %1323 = vmatprep.subr.mxu0 0.0
  %1324 = vmatpush1.msra.mxu0 0.0
  %1325 = vmatprep.subr.mxu0 0.0
  %1326 = vmatpush1.msra.mxu0 0.0
  %1327 = vmatprep.subr.mxu0 0.0
  %1328 = vmatpush1.msra.mxu0 0.0
  %1329 = vmatprep.subr.mxu0 0.0
  %1330 = vmatpush1.msra.mxu0 0.0
  %1331 = vmatprep.subr.mxu0 0.0
  %1332 = vmatpush1.msra.mxu0 0.0
  %1333 = vmatprep.subr.mxu0 0.0
  %1334 = vmatpush1.msra.mxu0 0.0
  %1335 = vmatprep.mubr.f32.mxu0 0.0
  %1336 = vmatmul.mubr.f32.gmra.mrb[0].mxu0 %v1270
  %v1337 = vpop.f32.mrb[0].mxu0
  %v1338 = vadd.f32 0.0, %v1337
  %v1339 = vpop.f32.mrb[0].mxu0
  %1340 = vdwg.mxu0
  %v1341 = vadd.f32 %v996, %v1338
  %v1342 = vmul.f32 %v1341, %v37
  %v1343 = vtanh.pop %v1342
  %v1344 = vmul.f32 %v1343, %v37
  %v1345 = vadd.f32 %v1344, %v38
  %1346 = vrot.lane.b32.xlu0 %v1345, 64
  %v1347 = vpop.permute.xlu0 %1346
  %v1348 = vmul.f32 %v1345, %v1347
  %1349 = vrot.lane.b32.xlu0 %v1348, 32
  %v1350 = vpop.permute.xlu0 %1349
  %v1351 = vmul.f32 %v1345, %v1268
  %v1352 = vadd.f32 %v1351, %v1350
  %v1353 = vtanh.pop %v1352
  %v1354 = vmul.f32 %v1347, %v1353
  %1355 = vmatprep.subr.mxu0 0.0
  %1356 = vmatpush1.msra.mxu0 %v891
  %1357 = vmatprep.subr.mxu0 0.0
  %1358 = vmatpush1.msra.mxu0 %v892
  %1359 = vmatprep.subr.mxu0 0.0
  %1360 = vmatpush1.msra.mxu0 %v893
  %1361 = vmatprep.subr.mxu0 0.0
  %1362 = vmatpush1.msra.mxu0 %v894
  %1363 = vmatprep.subr.mxu0 0.0
  %1364 = vmatpush1.msra.mxu0 %v895
  %1365 = vmatprep.subr.mxu0 0.0
  %1366 = vmatpush1.msra.mxu0 %v896
  %1367 = vmatprep.subr.mxu0 0.0
  %1368 = vmatpush1.msra.mxu0 %v897
  %1369 = vmatprep.subr.mxu0 0.0
  %1370 = vmatpush1.msra.mxu0 %v898
  %1371 = vmatprep.subr.mxu0 0.0
  %1372 = vmatpush1.msra.mxu0 %v899
  %1373 = vmatprep.subr.mxu0 0.0
  %1374 = vmatpush1.msra.mxu0 %v900
  %1375 = vmatprep.subr.mxu0 0.0
  %1376 = vmatpush1.msra.mxu0 %v901
  %1377 = vmatprep.subr.mxu0 0.0
  %1378 = vmatpush1.msra.mxu0 %v902
  %1379 = vmatprep.subr.mxu0 0.0
  %1380 = vmatpush1.msra.mxu0 %v903
  %1381 = vmatprep.subr.mxu0 0.0
  %1382 = vmatpush1.msra.mxu0 %v904
  %1383 = vmatprep.subr.mxu0 0.0
  %1384 = vmatpush1.msra.mxu0 %v905
  %1385 = vmatprep.subr.mxu0 0.0
  %1386 = vmatpush1.msra.mxu0 %v906
  %1387 = vmatprep.subr.mxu0 0.0
  %1388 = vmatpush1.msra.mxu0 0.0
  %1389 = vmatprep.subr.mxu0 0.0
  %1390 = vmatpush1.msra.mxu0 0.0
  %1391 = vmatprep.subr.mxu0 0.0
  %1392 = vmatpush1.msra.mxu0 0.0
  %1393 = vmatprep.subr.mxu0 0.0
  %1394 = vmatpush1.msra.mxu0 0.0
  %1395 = vmatprep.subr.mxu0 0.0
  %1396 = vmatpush1.msra.mxu0 0.0
  %1397 = vmatprep.subr.mxu0 0.0
  %1398 = vmatpush1.msra.mxu0 0.0
  %1399 = vmatprep.subr.mxu0 0.0
  %1400 = vmatpush1.msra.mxu0 0.0
  %1401 = vmatprep.subr.mxu0 0.0
  %1402 = vmatpush1.msra.mxu0 0.0
  %1403 = vmatprep.subr.mxu0 0.0
  %1404 = vmatpush1.msra.mxu0 0.0
  %1405 = vmatprep.subr.mxu0 0.0
  %1406 = vmatpush1.msra.mxu0 0.0
  %1407 = vmatprep.subr.mxu0 0.0
  %1408 = vmatpush1.msra.mxu0 0.0
  %1409 = vmatprep.subr.mxu0 0.0
  %1410 = vmatpush1.msra.mxu0 0.0
  %1411 = vmatprep.subr.mxu0 0.0
  %1412 = vmatpush1.msra.mxu0 0.0
  %1413 = vmatprep.subr.mxu0 0.0
  %1414 = vmatpush1.msra.mxu0 0.0
  %1415 = vmatprep.subr.mxu0 0.0
  %1416 = vmatpush1.msra.mxu0 0.0
  %1417 = vmatprep.subr.mxu0 0.0
  %1418 = vmatpush1.msra.mxu0 0.0
  %1419 = vmatprep.mubr.f32.mxu0 0.0
  %1420 = vmatmul.mubr.f32.gmra.mrb[0].mxu0 %v1354
  %v1421 = vpop.f32.mrb[0].mxu0
  %v1422 = vadd.f32 0.0, %v1421
  %v1423 = vpop.f32.mrb[0].mxu0
  %1424 = vdwg.mxu0
  %v1425 = vadd.f32 %v1001, %v1422
  %v1426 = vmul.f32 %v1425, %v37
  %v1427 = vtanh.pop %v1426
  %v1428 = vmul.f32 %v1427, %v37
  %v1429 = vadd.f32 %v1428, %v38
  %1430 = vrot.lane.b32.xlu0 %v1429, 64
  %v1431 = vpop.permute.xlu0 %1430
  %v1432 = vmul.f32 %v1429, %v1431
  %1433 = vrot.lane.b32.xlu0 %v1432, 32
  %v1434 = vpop.permute.xlu0 %1433
  %v1435 = vmul.f32 %v1429, %v1352
  %v1436 = vadd.f32 %v1435, %v1434
  %v1437 = vtanh.pop %v1436
  %v1438 = vmul.f32 %v1431, %v1437
  %1439 = vmatprep.subr.mxu0 0.0
  %1440 = vmatpush1.msra.mxu0 %v891
  %1441 = vmatprep.subr.mxu0 0.0
  %1442 = vmatpush1.msra.mxu0 %v892
  %1443 = vmatprep.subr.mxu0 0.0
  %1444 = vmatpush1.msra.mxu0 %v893
  %1445 = vmatprep.subr.mxu0 0.0
  %1446 = vmatpush1.msra.mxu0 %v894
  %1447 = vmatprep.subr.mxu0 0.0
  %1448 = vmatpush1.msra.mxu0 %v895
  %1449 = vmatprep.subr.mxu0 0.0
  %1450 = vmatpush1.msra.mxu0 %v896
  %1451 = vmatprep.subr.mxu0 0.0
  %1452 = vmatpush1.msra.mxu0 %v897
  %1453 = vmatprep.subr.mxu0 0.0
  %1454 = vmatpush1.msra.mxu0 %v898
  %1455 = vmatprep.subr.mxu0 0.0
  %1456 = vmatpush1.msra.mxu0 %v899
  %1457 = vmatprep.subr.mxu0 0.0
  %1458 = vmatpush1.msra.mxu0 %v900
  %1459 = vmatprep.subr.mxu0 0.0
  %1460 = vmatpush1.msra.mxu0 %v901
  %1461 = vmatprep.subr.mxu0 0.0
  %1462 = vmatpush1.msra.mxu0 %v902
  %1463 = vmatprep.subr.mxu0 0.0
  %1464 = vmatpush1.msra.mxu0 %v903
  %1465 = vmatprep.subr.mxu0 0.0
  %1466 = vmatpush1.msra.mxu0 %v904
  %1467 = vmatprep.subr.mxu0 0.0
  %1468 = vmatpush1.msra.mxu0 %v905
  %1469 = vmatprep.subr.mxu0 0.0
  %1470 = vmatpush1.msra.mxu0 %v906
  %1471 = vmatprep.subr.mxu0 0.0
  %1472 = vmatpush1.msra.mxu0 0.0
  %1473 = vmatprep.subr.mxu0 0.0
  %1474 = vmatpush1.msra.mxu0 0.0
  %1475 = vmatprep.subr.mxu0 0.0
  %1476 = vmatpush1.msra.mxu0 0.0
  %1477 = vmatprep.subr.mxu0 0.0
  %1478 = vmatpush1.msra.mxu0 0.0
  %1479 = vmatprep.subr.mxu0 0.0
  %1480 = vmatpush1.msra.mxu0 0.0
  %1481 = vmatprep.subr.mxu0 0.0
  %1482 = vmatpush1.msra.mxu0 0.0
  %1483 = vmatprep.subr.mxu0 0.0
  %1484 = vmatpush1.msra.mxu0 0.0
  %1485 = vmatprep.subr.mxu0 0.0
  %1486 = vmatpush1.msra.mxu0 0.0
  %1487 = vmatprep.subr.mxu0 0.0
  %1488 = vmatpush1.msra.mxu0 0.0
  %1489 = vmatprep.subr.mxu0 0.0
  %1490 = vmatpush1.msra.mxu0 0.0
  %1491 = vmatprep.subr.mxu0 0.0
  %1492 = vmatpush1.msra.mxu0 0.0
  %1493 = vmatprep.subr.mxu0 0.0
  %1494 = vmatpush1.msra.mxu0 0.0
  %1495 = vmatprep.subr.mxu0 0.0
  %1496 = vmatpush1.msra.mxu0 0.0
  %1497 = vmatprep.subr.mxu0 0.0
  %1498 = vmatpush1.msra.mxu0 0.0
  %1499 = vmatprep.subr.mxu0 0.0
  %1500 = vmatpush1.msra.mxu0 0.0
  %1501 = vmatprep.subr.mxu0 0.0
  %1502 = vmatpush1.msra.mxu0 0.0
  %1503 = vmatprep.mubr.f32.mxu0 0.0
  %1504 = vmatmul.mubr.f32.gmra.mrb[0].mxu0 %v1438
  %v1505 = vpop.f32.mrb[0].mxu0
  %v1506 = vadd.f32 0.0, %v1505
  %v1507 = vpop.f32.mrb[0].mxu0
  %1508 = vdwg.mxu0
  %v1509 = vadd.f32 %v1006, %v1506
  %v1510 = vmul.f32 %v1509, %v37
  %v1511 = vtanh.pop %v1510
  %v1512 = vmul.f32 %v1511, %v37
  %v1513 = vadd.f32 %v1512, %v38
  %1514 = vrot.lane.b32.xlu0 %v1513, 64
  %v1515 = vpop.permute.xlu0 %1514
  %v1516 = vmul.f32 %v1513, %v1515
  %1517 = vrot.lane.b32.xlu0 %v1516, 32
  %v1518 = vpop.permute.xlu0 %1517
  %v1519 = vmul.f32 %v1513, %v1436
  %v1520 = vadd.f32 %v1519, %v1518
  %v1521 = vtanh.pop %v1520
  %v1522 = vmul.f32 %v1515, %v1521
  %1523 = vmatprep.subr.mxu0 0.0
  %1524 = vmatpush1.msra.mxu0 %v891
  %1525 = vmatprep.subr.mxu0 0.0
  %1526 = vmatpush1.msra.mxu0 %v892
  %1527 = vmatprep.subr.mxu0 0.0
  %1528 = vmatpush1.msra.mxu0 %v893
  %1529 = vmatprep.subr.mxu0 0.0
  %1530 = vmatpush1.msra.mxu0 %v894
  %1531 = vmatprep.subr.mxu0 0.0
  %1532 = vmatpush1.msra.mxu0 %v895
  %1533 = vmatprep.subr.mxu0 0.0
  %1534 = vmatpush1.msra.mxu0 %v896
  %1535 = vmatprep.subr.mxu0 0.0
  %1536 = vmatpush1.msra.mxu0 %v897
  %1537 = vmatprep.subr.mxu0 0.0
  %1538 = vmatpush1.msra.mxu0 %v898
  %1539 = vmatprep.subr.mxu0 0.0
  %1540 = vmatpush1.msra.mxu0 %v899
  %1541 = vmatprep.subr.mxu0 0.0
  %1542 = vmatpush1.msra.mxu0 %v900
  %1543 = vmatprep.subr.mxu0 0.0
  %1544 = vmatpush1.msra.mxu0 %v901
  %1545 = vmatprep.subr.mxu0 0.0
  %1546 = vmatpush1.msra.mxu0 %v902
  %1547 = vmatprep.subr.mxu0 0.0
  %1548 = vmatpush1.msra.mxu0 %v903
  %1549 = vmatprep.subr.mxu0 0.0
  %1550 = vmatpush1.msra.mxu0 %v904
  %1551 = vmatprep.subr.mxu0 0.0
  %1552 = vmatpush1.msra.mxu0 %v905
  %1553 = vmatprep.subr.mxu0 0.0
  %1554 = vmatpush1.msra.mxu0 %v906
  %1555 = vmatprep.subr.mxu0 0.0
  %1556 = vmatpush1.msra.mxu0 0.0
  %1557 = vmatprep.subr.mxu0 0.0
  %1558 = vmatpush1.msra.mxu0 0.0
  %1559 = vmatprep.subr.mxu0 0.0
  %1560 = vmatpush1.msra.mxu0 0.0
  %1561 = vmatprep.subr.mxu0 0.0
  %1562 = vmatpush1.msra.mxu0 0.0
  %1563 = vmatprep.subr.mxu0 0.0
  %1564 = vmatpush1.msra.mxu0 0.0
  %1565 = vmatprep.subr.mxu0 0.0
  %1566 = vmatpush1.msra.mxu0 0.0
  %1567 = vmatprep.subr.mxu0 0.0
  %1568 = vmatpush1.msra.mxu0 0.0
  %1569 = vmatprep.subr.mxu0 0.0
  %1570 = vmatpush1.msra.mxu0 0.0
  %1571 = vmatprep.subr.mxu0 0.0
  %1572 = vmatpush1.msra.mxu0 0.0
  %1573 = vmatprep.subr.mxu0 0.0
  %1574 = vmatpush1.msra.mxu0 0.0
  %1575 = vmatprep.subr.mxu0 0.0
  %1576 = vmatpush1.msra.mxu0 0.0
  %1577 = vmatprep.subr.mxu0 0.0
  %1578 = vmatpush1.msra.mxu0 0.0
  %1579 = vmatprep.subr.mxu0 0.0
  %1580 = vmatpush1.msra.mxu0 0.0
  %1581 = vmatprep.subr.mxu0 0.0
  %1582 = vmatpush1.msra.mxu0 0.0
  %1583 = vmatprep.subr.mxu0 0.0
  %1584 = vmatpush1.msra.mxu0 0.0
  %1585 = vmatprep.subr.mxu0 0.0
  %1586 = vmatpush1.msra.mxu0 0.0
  %1587 = vmatprep.mubr.f32.mxu0 0.0
  %1588 = vmatmul.mubr.f32.gmra.mrb[0].mxu0 %v1522
  %v1589 = vpop.f32.mrb[0].mxu0
  %v1590 = vadd.f32 0.0, %v1589
  %v1591 = vpop.f32.mrb[0].mxu0
  %1592 = vdwg.mxu0
  %v1593 = vadd.f32 %v1011, %v1590
  %v1594 = vmul.f32 %v1593, %v37
  %v1595 = vtanh.pop %v1594
  %v1596 = vmul.f32 %v1595, %v37
  %v1597 = vadd.f32 %v1596, %v38
  %1598 = vrot.lane.b32.xlu0 %v1597, 64
  %v1599 = vpop.permute.xlu0 %1598
  %v1600 = vmul.f32 %v1597, %v1599
  %1601 = vrot.lane.b32.xlu0 %v1600, 32
  %v1602 = vpop.permute.xlu0 %1601
  %v1603 = vmul.f32 %v1597, %v1520
  %v1604 = vadd.f32 %v1603, %v1602
  %v1605 = vtanh.pop %v1604
  %v1606 = vmul.f32 %v1599, %v1605
  %1607 = vmatprep.subr.mxu0 0.0
  %1608 = vmatpush1.msra.mxu0 %v891
  %1609 = vmatprep.subr.mxu0 0.0
  %1610 = vmatpush1.msra.mxu0 %v892
  %1611 = vmatprep.subr.mxu0 0.0
  %1612 = vmatpush1.msra.mxu0 %v893
  %1613 = vmatprep.subr.mxu0 0.0
  %1614 = vmatpush1.msra.mxu0 %v894
  %1615 = vmatprep.subr.mxu0 0.0
  %1616 = vmatpush1.msra.mxu0 %v895
  %1617 = vmatprep.subr.mxu0 0.0
  %1618 = vmatpush1.msra.mxu0 %v896
  %1619 = vmatprep.subr.mxu0 0.0
  %1620 = vmatpush1.msra.mxu0 %v897
  %1621 = vmatprep.subr.mxu0 0.0
  %1622 = vmatpush1.msra.mxu0 %v898
  %1623 = vmatprep.subr.mxu0 0.0
  %1624 = vmatpush1.msra.mxu0 %v899
  %1625 = vmatprep.subr.mxu0 0.0
  %1626 = vmatpush1.msra.mxu0 %v900
  %1627 = vmatprep.subr.mxu0 0.0
  %1628 = vmatpush1.msra.mxu0 %v901
  %1629 = vmatprep.subr.mxu0 0.0
  %1630 = vmatpush1.msra.mxu0 %v902
  %1631 = vmatprep.subr.mxu0 0.0
  %1632 = vmatpush1.msra.mxu0 %v903
  %1633 = vmatprep.subr.mxu0 0.0
  %1634 = vmatpush1.msra.mxu0 %v904
  %1635 = vmatprep.subr.mxu0 0.0
  %1636 = vmatpush1.msra.mxu0 %v905
  %1637 = vmatprep.subr.mxu0 0.0
  %1638 = vmatpush1.msra.mxu0 %v906
  %1639 = vmatprep.subr.mxu0 0.0
  %1640 = vmatpush1.msra.mxu0 0.0
  %1641 = vmatprep.subr.mxu0 0.0
  %1642 = vmatpush1.msra.mxu0 0.0
  %1643 = vmatprep.subr.mxu0 0.0
  %1644 = vmatpush1.msra.mxu0 0.0
  %1645 = vmatprep.subr.mxu0 0.0
  %1646 = vmatpush1.msra.mxu0 0.0
  %1647 = vmatprep.subr.mxu0 0.0
  %1648 = vmatpush1.msra.mxu0 0.0
  %1649 = vmatprep.subr.mxu0 0.0
  %1650 = vmatpush1.msra.mxu0 0.0
  %1651 = vmatprep.subr.mxu0 0.0
  %1652 = vmatpush1.msra.mxu0 0.0
  %1653 = vmatprep.subr.mxu0 0.0
  %1654 = vmatpush1.msra.mxu0 0.0
  %1655 = vmatprep.subr.mxu0 0.0
  %1656 = vmatpush1.msra.mxu0 0.0
  %1657 = vmatprep.subr.mxu0 0.0
  %1658 = vmatpush1.msra.mxu0 0.0
  %1659 = vmatprep.subr.mxu0 0.0
  %1660 = vmatpush1.msra.mxu0 0.0
  %1661 = vmatprep.subr.mxu0 0.0
  %1662 = vmatpush1.msra.mxu0 0.0
  %1663 = vmatprep.subr.mxu0 0.0
  %1664 = vmatpush1.msra.mxu0 0.0
  %1665 = vmatprep.subr.mxu0 0.0
  %1666 = vmatpush1.msra.mxu0 0.0
  %1667 = vmatprep.subr.mxu0 0.0
  %1668 = vmatpush1.msra.mxu0 0.0
  %1669 = vmatprep.subr.mxu0 0.0
  %1670 = vmatpush1.msra.mxu0 0.0
  %1671 = vmatprep.mubr.f32.mxu0 0.0
  %1672 = vmatmul.mubr.f32.gmra.mrb[0].mxu0 %v1606
  %v1673 = vpop.f32.mrb[0].mxu0
  %v1674 = vadd.f32 0.0, %v1673
  %v1675 = vpop.f32.mrb[0].mxu0
  %1676 = vdwg.mxu0
  %v1677 = vadd.f32 %v1016, %v1674
  %v1678 = vmul.f32 %v1677, %v37
  %v1679 = vtanh.pop %v1678
  %v1680 = vmul.f32 %v1679, %v37
  %v1681 = vadd.f32 %v1680, %v38
  %1682 = vrot.lane.b32.xlu0 %v1681, 64
  %v1683 = vpop.permute.xlu0 %1682
  %v1684 = vmul.f32 %v1681, %v1683
  %1685 = vrot.lane.b32.xlu0 %v1684, 32
  %v1686 = vpop.permute.xlu0 %1685
  %v1687 = vmul.f32 %v1681, %v1604
  %v1688 = vadd.f32 %v1687, %v1686
  %v1689 = vtanh.pop %v1688
  %v1690 = vmul.f32 %v1683, %v1689
  %v1691 = vld [vmem:[%s7] sm:$0xff]
  %v1692 = vld [vmem:[%s7 + $0x8] sm:$0xff]
  %v1693 = vld [vmem:[%s7 + $0x10] sm:$0xff]
  %v1694 = vld [vmem:[%s7 + $0x18] sm:$0xff]
  %v1695 = vld [vmem:[%s7 + $0x20] sm:$0xff]
  %v1696 = vld [vmem:[%s7 + $0x28] sm:$0xff]
  %v1697 = vld [vmem:[%s7 + $0x30] sm:$0xff]
  %v1698 = vld [vmem:[%s7 + $0x38] sm:$0xff]
  %v1699 = vld [vmem:[%s7 + $0x40] sm:$0xff]
  %v1700 = vld [vmem:[%s7 + $0x48] sm:$0xff]
  %v1701 = vld [vmem:[%s7 + $0x50] sm:$0xff]
  %v1702 = vld [vmem:[%s7 + $0x58] sm:$0xff]
  %v1703 = vld [vmem:[%s7 + $0x60] sm:$0xff]
  %v1704 = vld [vmem:[%s7 + $0x68] sm:$0xff]
  %v1705 = vld [vmem:[%s7 + $0x70] sm:$0xff]
  %v1706 = vld [vmem:[%s7 + $0x78] sm:$0xff]
  %v1707 = vld [vmem:[%s8] sm:$0x1]
  %v1709 = vlaneseq
  %v1710 = vshrl.u32 %v1709, 7
  %v1711 = vsub.s32 0, %v1710
  %v1712 = vrot.slane %v1707, %v1711
  %1714 = vmatprep.subr.mxu0 0.0
  %1715 = vmatpush1.msra.mxu0 %v1691
  %1716 = vmatprep.subr.mxu0 0.0
  %1717 = vmatpush1.msra.mxu0 %v1692
  %1718 = vmatprep.subr.mxu0 0.0
  %1719 = vmatpush1.msra.mxu0 %v1693
  %1720 = vmatprep.subr.mxu0 0.0
  %1721 = vmatpush1.msra.mxu0 %v1694
  %1722 = vmatprep.subr.mxu0 0.0
  %1723 = vmatpush1.msra.mxu0 %v1695
  %1724 = vmatprep.subr.mxu0 0.0
  %1725 = vmatpush1.msra.mxu0 %v1696
  %1726 = vmatprep.subr.mxu0 0.0
  %1727 = vmatpush1.msra.mxu0 %v1697
  %1728 = vmatprep.subr.mxu0 0.0
  %1729 = vmatpush1.msra.mxu0 %v1698
  %1730 = vmatprep.subr.mxu0 0.0
  %1731 = vmatpush1.msra.mxu0 %v1699
  %1732 = vmatprep.subr.mxu0 0.0
  %1733 = vmatpush1.msra.mxu0 %v1700
  %1734 = vmatprep.subr.mxu0 0.0
  %1735 = vmatpush1.msra.mxu0 %v1701
  %1736 = vmatprep.subr.mxu0 0.0
  %1737 = vmatpush1.msra.mxu0 %v1702
  %1738 = vmatprep.subr.mxu0 0.0
  %1739 = vmatpush1.msra.mxu0 %v1703
  %1740 = vmatprep.subr.mxu0 0.0
  %1741 = vmatpush1.msra.mxu0 %v1704
  %1742 = vmatprep.subr.mxu0 0.0
  %1743 = vmatpush1.msra.mxu0 %v1705
  %1744 = vmatprep.subr.mxu0 0.0
  %1745 = vmatpush1.msra.mxu0 %v1706
  %1746 = vmatprep.subr.mxu0 0.0
  %1747 = vmatpush1.msra.mxu0 0.0
  %1748 = vmatprep.subr.mxu0 0.0
  %1749 = vmatpush1.msra.mxu0 0.0
  %1750 = vmatprep.subr.mxu0 0.0
  %1751 = vmatpush1.msra.mxu0 0.0
  %1752 = vmatprep.subr.mxu0 0.0
  %1753 = vmatpush1.msra.mxu0 0.0
  %1754 = vmatprep.subr.mxu0 0.0
  %1755 = vmatpush1.msra.mxu0 0.0
  %1756 = vmatprep.subr.mxu0 0.0
  %1757 = vmatpush1.msra.mxu0 0.0
  %1758 = vmatprep.subr.mxu0 0.0
  %1759 = vmatpush1.msra.mxu0 0.0
  %1760 = vmatprep.subr.mxu0 0.0
  %1761 = vmatpush1.msra.mxu0 0.0
  %1762 = vmatprep.subr.mxu0 0.0
  %1763 = vmatpush1.msra.mxu0 0.0
  %1764 = vmatprep.subr.mxu0 0.0
  %1765 = vmatpush1.msra.mxu0 0.0
  %1766 = vmatprep.subr.mxu0 0.0
  %1767 = vmatpush1.msra.mxu0 0.0
  %1768 = vmatprep.subr.mxu0 0.0
  %1769 = vmatpush1.msra.mxu0 0.0
  %1770 = vmatprep.subr.mxu0 0.0
  %1771 = vmatpush1.msra.mxu0 0.0
  %1772 = vmatprep.subr.mxu0 0.0
  %1773 = vmatpush1.msra.mxu0 0.0
  %1774 = vmatprep.subr.mxu0 0.0
  %1775 = vmatpush1.msra.mxu0 0.0
  %1776 = vmatprep.subr.mxu0 0.0
  %1777 = vmatpush1.msra.mxu0 0.0
  %1778 = vmatprep.mubr.f32.mxu0 0.0
  %1779 = vmatmul.mubr.f32.gmra.mrb[0].mxu0 %v1690
  %v1780 = vpop.f32.mrb[0].mxu0
  %v1781 = vadd.f32 %v1712, %v1780
  %v1782 = vpop.f32.mrb[0].mxu0
  %1783 = vdwg.mxu0
  %vm1784 = vcmask 39936
  %1785 = vst.msk [vmem:[%s9] sm:$0xff] %vm1784, %v1781
  // Predicated region
  $region38: #{lstm_forward.1} parent=0 // pred_check
    _
  $region39: #{lstm_forward.1} parent=0 // pred_check_branch
    %1787 = sbr.rel (0) target = $region41
  $region40: #{lstm_forward.1} parent=0 // pred_region
    _
  $region41: #{lstm_forward.1} parent=0 // pred_fallthru
    _
  // Predicated region
  $region42: #{lstm_forward.1} parent=0 // pred_check
    _
  $region43: #{lstm_forward.1} parent=0 // pred_check_branch
    %1789 = sbr.rel (0) target = $region45
  $region44: #{lstm_forward.1} parent=0 // pred_region
    _
  $region45: #{lstm_forward.1} parent=0 // pred_fallthru
    _

</llo_original>
